<compile_context>
chip_gen: v5e
topology: v5e:2x2
jax: 0.10.0
libtpu: 0.0.40
codegen_flags: <defaults>
</compile_context>

<pallas_src>
import jax
import jax.numpy as jnp
from jax.experimental import pallas as pl
from jax.experimental.pallas import tpu as pltpu

# ---------------- config (opt.*) ----------------
B  = 2            # batch
L  = 16           # text sequence length (== max text_len, see __main__)
LA = 8            # aspect sequence length
V  = 32           # vocab size
E  = 32           # opt.embed_dim
H  = 32           # opt.hidden_dim
NH = 8            # attention n_head
DH = E // NH      # Attention hidden_dim default: embed_dim // n_head
P  = 3            # opt.polarities_dim

HD = NH * DH      # 32  (attention inner width)
HL = NH * L       # 128 (lane-dense, head-major score width)
OUT_ROWS = B * L + B * LA + B   # 50: [score_t rows | score_a rows | logits rows]


# ---------------- packed-slab layouts ----------------

class _Layout:
    """Row layout of a lane-padded (rows, 128) f32 VMEM slab (8-row aligned entries)."""
    LANES = 128

    def __init__(self):
        self.offsets = {}
        self.rows = 0

    def add(self, name, r, c):
        assert c <= self.LANES
        self.offsets[name] = (self.rows, (r, c))
        self.rows += -(-r // 8) * 8

    def pack(self, arrays):
        slab = jnp.zeros((self.rows, self.LANES), jnp.float32)
        for name, (off, (r, c)) in self.offsets.items():
            a = jnp.asarray(arrays[name], jnp.float32).reshape(r, c)
            slab = slab.at[off:off + r, :c].set(a)
        return slab


def _build_layouts():
    cl = _Layout()
    for name, shape in [
        ('w_text', (E, 3 * HD)), ('b_text', (1, 3 * HD)),      # [k_wk | k_wq | q_wk]
        ('w_qq', (E, HD)), ('b_qq', (1, HD)),
        ('k_wske', (HD, HL)), ('k_wsqe', (HD, HL)),
        ('q_wske', (HD, HL)), ('q_wsqe', (HD, HL)),
        ('k_wp', (HD, H)), ('k_bp', (1, H)),
        ('q_wp', (HD, H)), ('q_bp', (1, H)),
        ('c_w1', (H, H)), ('c_b1', (1, H)), ('c_w2', (H, H)), ('c_b2', (1, H)),
        ('t_w1', (H, H)), ('t_b1', (1, H)), ('t_w2', (H, H)), ('t_b2', (1, H)),
        ('g1_w', (H, H)), ('g1_a2', (H, 2)), ('g1_b', (1, H)),
        ('g2_w', (H, H)), ('g2_a2', (H, 2)), ('g2_b', (1, H)),
        ('fc_wx', (H, 128)), ('fc_wt', (H, 128)), ('fc_wa', (H, 128)), ('fc_b', (1, 128)),
        ('seg_ones', (HL, HL)), ('repmat', (HL, L)), ('headmask', (HL, HD)),
        ('rowsel', (B * L, HL)), ('bcast_t', (B * L, B * L)), ('bcast_a', (B * LA, B * L)),
        ('eye_l', (L, L)),
    ]:
        cl.add(name, *shape)
    dl = _Layout()
    for name, shape in [
        ('text', (B * L, E)), ('aspect', (B * LA, E)),
        ('maskb', (B * L, L)),                       # additive GAT edge mask, target-major
        ('pooln', (B, 2 * B * L + B * LA)),          # length-normalized pooling rows
    ]:
        dl.add(name, *shape)
    return cl, dl


CONST_LAYOUT, DATA_LAYOUT = _build_layouts()


def _pattern(shape, fn):
    r = jax.lax.broadcasted_iota(jnp.int32, shape, 0)
    c = jax.lax.broadcasted_iota(jnp.int32, shape, 1)
    return fn(r, c).astype(jnp.float32)


# ---------------- fused Pallas kernel ----------------

def _fused_forward_kernel(data_ref, const_ref, out_ref):
    f32, bf16 = jnp.float32, jnp.bfloat16

    def C(name):
        off, (r, c) = CONST_LAYOUT.offsets[name]
        return const_ref[off:off + r, :c]

    def D(name):
        off, (r, c) = DATA_LAYOUT.offsets[name]
        return data_ref[off:off + r, :c]

    def mm(a, b):
        # bf16 MXU operands, f32 accumulation (halves matmul passes on v6e/v7x MXU).
        return jnp.dot(a.astype(bf16), b.astype(bf16), preferred_element_type=f32)

    # Constants / data reused across sections: loaded once (no repeated ref reads in loops).
    seg_ones = C('seg_ones')      # (128,128) per-head block sum
    repmat   = C('repmat')        # (128, 16) key replication per head
    headmask = C('headmask')      # (128, 32) per-head feature mask
    rowsel   = C('rowsel')        # (32, 128) per-batch diagonal selector
    eye_l    = C('eye_l')         # (16, 16)
    maskb    = D('maskb')         # (32, 16)  additive (0 / -1e30) edge mask, target-major

    text   = D('text')            # (B*L,  E)
    aspect = D('aspect')          # (B*LA, E)

    # ---- merged text projections: attn_k keys+queries and attn_q keys in ONE matmul ----
    proj_text = mm(text, C('w_text')) + C('b_text')            # (B*L, 96) = [kx_k|qx_k|kx_q]
    kx_k = proj_text[:, 0 * HD:1 * HD]
    qx_k = proj_text[:, 1 * HD:2 * HD]
    kx_q = proj_text[:, 2 * HD:3 * HD]
    qx_q = mm(aspect, C('w_qq')) + C('b_qq')                    # (B*LA, HD)

    # ---- multi-head 'mlp'-score attention: heads vectorized, softmax batched over B ----
    def attention(kx, qx, lq, wske, wsqe, wp, bp, bcast, out_row0):
        sk_full = mm(kx, wske)                                  # (B*L,  NH*L)
        sq_e    = mm(qx, wsqe)                                  # (B*lq, NH*L)
        sk_bias = mm(bcast, sk_full * rowsel)                   # (B*lq, NH*L): per-batch key scores
        s = jnp.tanh(sq_e + sk_bias)
        p = jnp.exp(s)                                          # tanh in [-1,1] -> no max shift needed
        attn = p * pl.reciprocal(mm(p, seg_ones), approx=True)  # segmented per-head softmax
        out_ref[out_row0:out_row0 + B * lq, :] = attn           # lane-dense full-width store
        ctxs = []
        for b in range(B):                                      # only the head-gather stays per-sample
            kx_rep = mm(repmat, kx[b * L:(b + 1) * L]) * headmask        # (NH*L, NH*DH)
            ctxs.append(mm(attn[b * lq:(b + 1) * lq], kx_rep))           # (lq, NH*DH)
        ctx = jnp.concatenate(ctxs, axis=0)                              # (B*lq, NH*DH)
        return mm(ctx, wp) + bp                                          # (B*lq, H)

    def ffn(x, w1, b1, w2, b2):
        return mm(jnp.maximum(mm(x, w1) + b1, 0.0), w2) + b2

    h_text = attention(kx_k, qx_k, L, C('k_wske'), C('k_wsqe'), C('k_wp'), C('k_bp'),
                       C('bcast_t'), 0)
    h_text = ffn(h_text, C('c_w1'), C('c_b1'), C('c_w2'), C('c_b2'))               # (B*L, H)
    h_aspect = attention(kx_q, qx_q, LA, C('q_wske'), C('q_wsqe'), C('q_wp'), C('q_bp'),
                         C('bcast_a'), B * L)
    h_aspect = ffn(h_aspect, C('t_w1'), C('t_b1'), C('t_w2'), C('t_b2'))            # (B*LA, H)

    # ---- two stacked GATConv layers (heads=1, no self loops) + ReLU, target-major ----
    def gat_layer(x_full, w, a2, bias):
        xp_full = mm(x_full, w)                   # (B*L, H)  batched projection (shared weights)
        cf_full = mm(xp_full, a2)                 # (B*L, 2)  fused [a_src | a_dst] coefficients
        outs = []
        for b in range(B):
            xp = xp_full[b * L:(b + 1) * L]       # (L, H)
            cf = cf_full[b * L:(b + 1) * L]       # (L, 2)
            a_src_row = jnp.sum(cf[:, 0:1] * eye_l, axis=0, keepdims=True)   # (1, L)
            e = cf[:, 1:2] + a_src_row            # (L, L): e[target, source]
            e = jnp.where(e > 0, e, 0.2 * e)      # LeakyReLU(0.2)
            e = e + maskb[b * L:(b + 1) * L]      # precomputed additive -1e30 edge mask
            m = jnp.max(e, axis=-1, keepdims=True)                           # lane reduction
            pj = jnp.exp(e - m)                   # masked entries underflow to exactly 0
            denom = jnp.maximum(jnp.sum(pj, axis=-1, keepdims=True), 1e-30)
            alpha = pj * pl.reciprocal(denom, approx=True)
            outs.append(jnp.maximum(mm(alpha, xp) + bias, 0.0))
        return jnp.concatenate(outs, axis=0)      # (B*L, H)

    x1 = gat_layer(h_text, C('g1_w'), C('g1_a2'), C('g1_b'))
    x_gat = gat_layer(x1, C('g2_w'), C('g2_a2'), C('g2_b'))

    # ---- fused length-normalized means + fc:
    #      logits = pooln @ [x_gat@Wx ; h_text@Wt ; h_aspect@Wa] + b
    #      (1/len normalization is folded into the wrapper-built pooling rows) ----
    v = jnp.concatenate([mm(x_gat, C('fc_wx')),
                         mm(h_text, C('fc_wt')),
                         mm(h_aspect, C('fc_wa'))], axis=0)      # (2*B*L + B*LA, 128)
    logits = mm(D('pooln'), v) + C('fc_b')                       # (B, 128): lanes >= P are zero
    out_ref[B * L + B * LA:OUT_ROWS, :] = logits


# ---------------- wrapper-side constant packing (run once) ----------------

def pack_constants(params):
    def expand_score(w_half):
        # (DH,) -> (NH*DH, NH*L): block-diagonal replication so kx @ wske lands lane-dense
        # in the (head, key) layout.
        return jnp.kron(jnp.eye(NH, dtype=jnp.float32),
                        jnp.outer(w_half, jnp.ones((L,), jnp.float32)))

    def pad_lanes(a, lanes=128):
        a = jnp.asarray(a, jnp.float32)
        return jnp.zeros((a.shape[0], lanes), jnp.float32).at[:, :a.shape[1]].set(a)

    ak, aq = params['attn_k'], params['attn_q']
    c, t = params['ffn_c'], params['ffn_t']
    g1, g2 = params['gc1'], params['gc2']
    fc = params['fc']

    arrays = {
        'w_text': jnp.concatenate([ak['wk'], ak['wq'], aq['wk']], axis=1),
        'b_text': jnp.concatenate([ak['bk'], ak['bq'], aq['bk']], axis=1),
        'w_qq': aq['wq'], 'b_qq': aq['bq'],
        'k_wske': expand_score(ak['w_mlp'][:DH]), 'k_wsqe': expand_score(ak['w_mlp'][DH:]),
        'q_wske': expand_score(aq['w_mlp'][:DH]), 'q_wsqe': expand_score(aq['w_mlp'][DH:]),
        'k_wp': ak['wp'], 'k_bp': ak['bp'], 'q_wp': aq['wp'], 'q_bp': aq['bp'],
        'c_w1': c['w1'], 'c_b1': c['b1'], 'c_w2': c['w2'], 'c_b2': c['b2'],
        't_w1': t['w1'], 't_b1': t['b1'], 't_w2': t['w2'], 't_b2': t['b2'],
        'g1_w': g1['w'],
        'g1_a2': jnp.concatenate([g1['a_src'].reshape(H, 1), g1['a_dst'].reshape(H, 1)], axis=1),
        'g1_b': g1['bias'],
        'g2_w': g2['w'],
        'g2_a2': jnp.concatenate([g2['a_src'].reshape(H, 1), g2['a_dst'].reshape(H, 1)], axis=1),
        'g2_b': g2['bias'],
        'fc_wx': pad_lanes(fc['wx']), 'fc_wt': pad_lanes(fc['wt']),
        'fc_wa': pad_lanes(fc['wa']), 'fc_b': pad_lanes(fc['b']),
        'seg_ones': _pattern((HL, HL),     lambda r, cc: (r // L) == (cc // L)),
        'repmat':   _pattern((HL, L),      lambda r, cc: (r % L) == cc),
        'headmask': _pattern((HL, HD),     lambda r, cc: (r // L) == (cc // DH)),
        'rowsel':   _pattern((B * L, HL),  lambda r, cc: (r % L) == (cc % L)),
        'bcast_t':  _pattern((B * L, B * L),   lambda r, cc: (r // L) == (cc // L)),
        'bcast_a':  _pattern((B * LA, B * L),  lambda r, cc: (r // LA) == (cc // L)),
        'eye_l':    _pattern((L, L),       lambda r, cc: r == cc),
    }
    return CONST_LAYOUT.pack(arrays)


# ---------------- forward (single pallas_call, 2 packed inputs, 1 packed output) ----------------

def forward(embedding, const_slab, text_indices, aspect_indices, left_indices, adj):
    text_len = jnp.sum(text_indices != 0, axis=-1) + 5            # torch.add(text_len, 5)
    aspect_len = jnp.sum(aspect_indices != 0, axis=-1)
    left_len = jnp.sum(left_indices != 0, axis=-1)
    aspect_double_idx = jnp.stack([left_len, left_len + aspect_len - 1], axis=1)  # noqa: F841
    # (aspect_double_idx is computed but unused in the reference forward)

    text = embedding[text_indices]                                 # (B, L, E)
    # SqueezeEmbedding (pack/pad): zero positions beyond each text_len; inputs are built so
    # that max(text_len) == L, hence no dynamic truncation is required.
    # TODO(synk): dynamic truncation to max(text_len) needs data-dependent shapes; not expressible.
    text = text * (jnp.arange(L)[None, :] < text_len[:, None])[..., None].astype(jnp.float32)
    aspect = embedding[aspect_indices]                             # (B, LA, E)
    aspect = aspect * (jnp.arange(LA)[None, :] < aspect_len[:, None])[..., None].astype(jnp.float32)

    # Additive GAT mask, target-major: maskb[b*L + target, source].
    maskb = jnp.where(jnp.swapaxes(adj, 1, 2) != 0.0, 0.0, -1e30).astype(jnp.float32)
    maskb = maskb.reshape(B * L, L)

    # Length-normalized pooling rows (1/len folded in wrapper-side; row order matches the
    # in-kernel row stack [x_gat ; h_text ; h_aspect]).
    tlenf = text_len.astype(jnp.float32)[:, None]
    alenf = aspect_len.astype(jnp.float32)[:, None]
    pool_t = _pattern((B, B * L),  lambda r, cc: r == (cc // L))
    pool_a = _pattern((B, B * LA), lambda r, cc: r == (cc // LA))
    pooln = jnp.concatenate([pool_t / tlenf, pool_t / tlenf, pool_a / alenf], axis=1)

    data_slab = DATA_LAYOUT.pack({
        'text': text.reshape(B * L, E),
        'aspect': aspect.reshape(B * LA, E),
        'maskb': maskb,
        'pooln': pooln,
    })

    vmem = pl.BlockSpec(memory_space=pltpu.MemorySpace.VMEM)
    out = pl.pallas_call(
        _fused_forward_kernel,
        in_specs=[vmem, vmem],
        out_specs=vmem,
        out_shape=jax.ShapeDtypeStruct((OUT_ROWS, HL), jnp.float32),
    )(data_slab, const_slab)

    # torch returns score as (n_head * B, q_len, k_len), head-major
    score_t = out[0:B * L].reshape(B, L, NH, L).transpose(2, 0, 1, 3).reshape(NH * B, L, L)
    score_a = out[B * L:B * L + B * LA].reshape(B, LA, NH, L).transpose(2, 0, 1, 3).reshape(NH * B, LA, L)
    logits = out[B * L + B * LA:OUT_ROWS, :P]
    return logits, score_t, score_a


# ---------------- deterministic parameter init ----------------

def init_params(key):
    ks = iter(jax.random.split(key, 40))

    def nrm(shape, scale=0.1):
        return (scale * jax.random.normal(next(ks), shape)).astype(jnp.float32)

    emb = nrm((V, E), 1.0)
    emb = emb.at[0].set(0.0)                                      # padding row

    def attn_params():
        return dict(wk=nrm((E, NH * DH)), bk=nrm((1, NH * DH)),
                    wq=nrm((E, NH * DH)), bq=nrm((1, NH * DH)),
                    w_mlp=nrm((2 * DH,)),
                    wp=nrm((NH * DH, H)), bp=nrm((1, H)))

    def ffn_params():
        return dict(w1=nrm((H, H)), b1=nrm((1, H)), w2=nrm((H, H)), b2=nrm((1, H)))

    def gat_params():
        return dict(w=nrm((H, H)), a_src=nrm((1, H)), a_dst=nrm((1, H)), bias=nrm((1, H)))

    return dict(embedding=emb,
                attn_k=attn_params(), attn_q=attn_params(),
                ffn_c=ffn_params(), ffn_t=ffn_params(),
                gc1=gat_params(), gc2=gat_params(),
                fc=dict(wx=nrm((H, P)), wt=nrm((H, P)), wa=nrm((H, P)), b=nrm((1, P))))


# ---------------- pure-JAX reference (for correctness check) ----------------

def reference_forward(params, text_indices, aspect_indices, left_indices, adj):
    hp = jax.lax.Precision.HIGHEST
    text_len = jnp.sum(text_indices != 0, axis=-1) + 5
    aspect_len = jnp.sum(aspect_indices != 0, axis=-1)
    emb = params['embedding']
    text = emb[text_indices] * (jnp.arange(L)[None, :] < text_len[:, None])[..., None]
    aspect = emb[aspect_indices] * (jnp.arange(LA)[None, :] < aspect_len[:, None])[..., None]

    def ref_attn(k, q, prm):
        Bn, Lk, _ = k.shape
        Lq = q.shape[1]
        kx = jnp.einsum('ble,eo->blo', k, prm['wk'], precision=hp) + prm['bk'][0]
        qx = jnp.einsum('ble,eo->blo', q, prm['wq'], precision=hp) + prm['bq'][0]
        kxh = kx.reshape(Bn, Lk, NH, DH)
        qxh = qx.reshape(Bn, Lq, NH, DH)
        sk = jnp.einsum('bkhd,d->bhk', kxh, prm['w_mlp'][:DH], precision=hp)
        sq = jnp.einsum('bqhd,d->bhq', qxh, prm['w_mlp'][DH:], precision=hp)
        sc = jnp.tanh(sq[:, :, :, None] + sk[:, :, None, :])      # (B, NH, Lq, Lk)
        attn = jax.nn.softmax(sc, axis=-1)
        out_h = jnp.einsum('bhqk,bkhd->bqhd', attn, kxh, precision=hp)
        out = out_h.reshape(Bn, Lq, NH * DH)
        out = jnp.einsum('blo,oh->blh', out, prm['wp'], precision=hp) + prm['bp'][0]
        score = jnp.transpose(attn, (1, 0, 2, 3)).reshape(NH * Bn, Lq, Lk)
        return out, score

    def ref_ffn(x, prm):
        h1 = jnp.maximum(jnp.einsum('blh,ho->blo', x, prm['w1'], precision=hp) + prm['b1'][0], 0.0)
        return jnp.einsum('blh,ho->blo', h1, prm['w2'], precision=hp) + prm['b2'][0]

    def ref_gat_layer(x, a, prm):
        xp = jnp.dot(x, prm['w'], precision=hp)
        a_src = jnp.sum(xp * prm['a_src'][0], axis=-1, keepdims=True)
        a_dst = jnp.sum(xp * prm['a_dst'][0], axis=-1, keepdims=True)
        e = a_src + a_dst.T
        e = jnp.where(e > 0, e, 0.2 * e)
        mask = a != 0.0
        e = jnp.where(mask, e, -1e30)
        m = jnp.max(e, axis=0, keepdims=True)
        p = jnp.where(mask, jnp.exp(e - m), 0.0)
        alpha = p / jnp.maximum(jnp.sum(p, axis=0, keepdims=True), 1e-30)
        return jnp.dot(alpha.T, xp, precision=hp) + prm['bias'][0]

    h_text, ht_score = ref_attn(text, text, params['attn_k'])
    h_text = ref_ffn(h_text, params['ffn_c'])
    h_aspect, ha_score = ref_attn(text, aspect, params['attn_q'])
    h_aspect = ref_ffn(h_aspect, params['ffn_t'])

    xs = []
    for i in range(text.shape[0]):
        x1 = jnp.maximum(ref_gat_layer(h_text[i], adj[i], params['gc1']), 0.0)
        x2 = jnp.maximum(ref_gat_layer(x1, adj[i], params['gc2']), 0.0)
        xs.append(x2)
    x_gat = jnp.stack(xs)

    tlen = text_len.astype(jnp.float32)[:, None]
    alen = aspect_len.astype(jnp.float32)[:, None]
    x_mean = jnp.sum(x_gat, axis=1) / tlen
    ht_mean = jnp.sum(h_text, axis=1) / tlen
    ha_mean = jnp.sum(h_aspect, axis=1) / alen
    fc = params['fc']
    logits = (jnp.dot(x_mean, fc['wx'], precision=hp)
              + jnp.dot(ht_mean, fc['wt'], precision=hp)
              + jnp.dot(ha_mean, fc['wa'], precision=hp) + fc['b'][0])
    return logits, ht_score, ha_score


# ---------------- main ----------------

if __name__ == "__main__":
    key = jax.random.PRNGKey(0)
    k_inp, k_par = jax.random.split(key)
    params = init_params(k_par)
    const_slab = pack_constants(params)          # packed once (weights + pattern matrices)

    ki = jax.random.split(k_inp, 4)
    # text_len = (#nonzero) + 5; build inputs so max(text_len) == L (no dynamic truncation needed)
    nz_text = jnp.array([L - 5, L - 8], dtype=jnp.int32)
    text_indices = jnp.where(jnp.arange(L)[None, :] < nz_text[:, None],
                             jax.random.randint(ki[0], (B, L), 1, V), 0).astype(jnp.int32)
    nz_asp = jnp.array([LA, 3], dtype=jnp.int32)
    aspect_indices = jnp.where(jnp.arange(LA)[None, :] < nz_asp[:, None],
                               jax.random.randint(ki[1], (B, LA), 1, V), 0).astype(jnp.int32)
    nz_left = jnp.array([4, 2], dtype=jnp.int32)
    left_indices = jnp.where(jnp.arange(L)[None, :] < nz_left[:, None],
                             jax.random.randint(ki[2], (B, L), 1, V), 0).astype(jnp.int32)
    adj = (jax.random.uniform(ki[3], (B, L, L)) < 0.3).astype(jnp.float32)
    adj = jnp.maximum(adj, jnp.eye(L, dtype=jnp.float32)[None])  # every node has an incoming edge

    fwd = jax.jit(forward)
    logits, ht_score, ha_score = jax.block_until_ready(
        fwd(params['embedding'], const_slab, text_indices, aspect_indices, left_indices, adj))

    ref_logits, ref_ht, ref_ha = reference_forward(
        params, text_indices, aspect_indices, left_indices, adj)

    assert logits.shape == (B, P)
    assert ht_score.shape == (NH * B, L, L)
    assert ha_score.shape == (NH * B, LA, L)
    # Kernel uses bf16 MXU operands (f32 accumulation) + EUP approx reciprocals, so compare
    # against the f32 HIGHEST-precision reference with a tolerance that absorbs bf16 rounding.
    assert jnp.allclose(logits, ref_logits, atol=2e-2, rtol=2e-2)
    assert jnp.allclose(ht_score, ref_ht, atol=2e-2, rtol=2e-2)
    assert jnp.allclose(ha_score, ref_ha, atol=2e-2, rtol=2e-2)
    print("KERNEL_OK")
</pallas_src>

<mosaic_0001>
module attributes {stable_mosaic.version = 11 : i64} {
  func.func @_fused_forward_kernel(%arg0: memref<88x128xf32, #tpu.memory_space<vmem>>, %arg1: memref<1176x128xf32, #tpu.memory_space<vmem>>, %arg2: memref<50x128xf32, #tpu.memory_space<vmem>>) attributes {dimension_semantics = [], scalar_prefetch = 0 : i64, scratch_operands = 0 : i64, tpu.core_type = #tpu.core_type<tc>} {
    %c696 = arith.constant 696 : index
    %c0 = arith.constant 0 : index
    %0 = vector.load %arg1[%c696, %c0] : memref<1176x128xf32, #tpu.memory_space<vmem>>, vector<128x128xf32>
    %c824 = arith.constant 824 : index
    %c0_0 = arith.constant 0 : index
    %1 = vector.load %arg1[%c824, %c0_0] : memref<1176x128xf32, #tpu.memory_space<vmem>>, vector<128x16xf32>
    %c952 = arith.constant 952 : index
    %c0_1 = arith.constant 0 : index
    %2 = vector.load %arg1[%c952, %c0_1] : memref<1176x128xf32, #tpu.memory_space<vmem>>, vector<128x32xf32>
    %c1080 = arith.constant 1080 : index
    %c0_2 = arith.constant 0 : index
    %3 = vector.load %arg1[%c1080, %c0_2] : memref<1176x128xf32, #tpu.memory_space<vmem>>, vector<32x128xf32>
    %c1160 = arith.constant 1160 : index
    %c0_3 = arith.constant 0 : index
    %4 = vector.load %arg1[%c1160, %c0_3] : memref<1176x128xf32, #tpu.memory_space<vmem>>, vector<16x16xf32>
    %c48 = arith.constant 48 : index
    %c0_4 = arith.constant 0 : index
    %5 = vector.load %arg0[%c48, %c0_4] : memref<88x128xf32, #tpu.memory_space<vmem>>, vector<32x16xf32>
    %c0_5 = arith.constant 0 : index
    %c0_6 = arith.constant 0 : index
    %6 = vector.load %arg0[%c0_5, %c0_6] : memref<88x128xf32, #tpu.memory_space<vmem>>, vector<32x32xf32>
    %c32 = arith.constant 32 : index
    %c0_7 = arith.constant 0 : index
    %7 = vector.load %arg0[%c32, %c0_7] : memref<88x128xf32, #tpu.memory_space<vmem>>, vector<16x32xf32>
    %c0_8 = arith.constant 0 : index
    %c0_9 = arith.constant 0 : index
    %8 = vector.load %arg1[%c0_8, %c0_9] : memref<1176x128xf32, #tpu.memory_space<vmem>>, vector<32x96xf32>
    %9 = arith.truncf %6 : vector<32x32xf32> to vector<32x32xbf16>
    %10 = arith.truncf %8 : vector<32x96xf32> to vector<32x96xbf16>
    %cst = arith.constant dense<0.000000e+00> : vector<32x96xf32>
    %11 = tpu.matmul %9, %10, %cst {dimension_numbers = #tpu.dot_dimension_numbers<[1], [0], [0], [1], [0, 0, 1, 1], [], []>} : vector<32x32xbf16>, vector<32x96xbf16>, vector<32x96xf32> -> vector<32x96xf32>
    %c32_10 = arith.constant 32 : index
    %c0_11 = arith.constant 0 : index
    %12 = vector.load %arg1[%c32_10, %c0_11] : memref<1176x128xf32, #tpu.memory_space<vmem>>, vector<1x96xf32>
    %13 = vector.broadcast %12 : vector<1x96xf32> to vector<32x96xf32>
    %14 = arith.addf %11, %13 : vector<32x96xf32>
    %15 = vector.extract_strided_slice %14 {offsets = [0, 0], sizes = [32, 32], strides = [1, 1]} : vector<32x96xf32> to vector<32x32xf32>
    %16 = vector.extract_strided_slice %14 {offsets = [0, 32], sizes = [32, 32], strides = [1, 1]} : vector<32x96xf32> to vector<32x32xf32>
    %17 = vector.extract_strided_slice %14 {offsets = [0, 64], sizes = [32, 32], strides = [1, 1]} : vector<32x96xf32> to vector<32x32xf32>
    %c40 = arith.constant 40 : index
    %c0_12 = arith.constant 0 : index
    %18 = vector.load %arg1[%c40, %c0_12] : memref<1176x128xf32, #tpu.memory_space<vmem>>, vector<32x32xf32>
    %19 = arith.truncf %7 : vector<16x32xf32> to vector<16x32xbf16>
    %20 = arith.truncf %18 : vector<32x32xf32> to vector<32x32xbf16>
    %cst_13 = arith.constant dense<0.000000e+00> : vector<16x32xf32>
    %21 = tpu.matmul %19, %20, %cst_13 {dimension_numbers = #tpu.dot_dimension_numbers<[1], [0], [0], [1], [0, 0, 1, 1], [], []>} : vector<16x32xbf16>, vector<32x32xbf16>, vector<16x32xf32> -> vector<16x32xf32>
    %c72 = arith.constant 72 : index
    %c0_14 = arith.constant 0 : index
    %22 = vector.load %arg1[%c72, %c0_14] : memref<1176x128xf32, #tpu.memory_space<vmem>>, vector<1x32xf32>
    %23 = vector.broadcast %22 : vector<1x32xf32> to vector<16x32xf32>
    %24 = arith.addf %21, %23 : vector<16x32xf32>
    %c80 = arith.constant 80 : index
    %c0_15 = arith.constant 0 : index
    %25 = vector.load %arg1[%c80, %c0_15] : memref<1176x128xf32, #tpu.memory_space<vmem>>, vector<32x128xf32>
    %c112 = arith.constant 112 : index
    %c0_16 = arith.constant 0 : index
    %26 = vector.load %arg1[%c112, %c0_16] : memref<1176x128xf32, #tpu.memory_space<vmem>>, vector<32x128xf32>
    %c208 = arith.constant 208 : index
    %c0_17 = arith.constant 0 : index
    %27 = vector.load %arg1[%c208, %c0_17] : memref<1176x128xf32, #tpu.memory_space<vmem>>, vector<32x32xf32>
    %c240 = arith.constant 240 : index
    %c0_18 = arith.constant 0 : index
    %28 = vector.load %arg1[%c240, %c0_18] : memref<1176x128xf32, #tpu.memory_space<vmem>>, vector<1x32xf32>
    %c1112 = arith.constant 1112 : index
    %c0_19 = arith.constant 0 : index
    %29 = vector.load %arg1[%c1112, %c0_19] : memref<1176x128xf32, #tpu.memory_space<vmem>>, vector<32x32xf32>
    %30 = arith.truncf %15 : vector<32x32xf32> to vector<32x32xbf16>
    %31 = arith.truncf %25 : vector<32x128xf32> to vector<32x128xbf16>
    %cst_20 = arith.constant dense<0.000000e+00> : vector<32x128xf32>
    %32 = tpu.matmul %30, %31, %cst_20 {dimension_numbers = #tpu.dot_dimension_numbers<[1], [0], [0], [1], [0, 0, 1, 1], [], []>} : vector<32x32xbf16>, vector<32x128xbf16>, vector<32x128xf32> -> vector<32x128xf32>
    %33 = arith.truncf %16 : vector<32x32xf32> to vector<32x32xbf16>
    %34 = arith.truncf %26 : vector<32x128xf32> to vector<32x128xbf16>
    %cst_21 = arith.constant dense<0.000000e+00> : vector<32x128xf32>
    %35 = tpu.matmul %33, %34, %cst_21 {dimension_numbers = #tpu.dot_dimension_numbers<[1], [0], [0], [1], [0, 0, 1, 1], [], []>} : vector<32x32xbf16>, vector<32x128xbf16>, vector<32x128xf32> -> vector<32x128xf32>
    %36 = arith.mulf %32, %3 : vector<32x128xf32>
    %37 = arith.truncf %29 : vector<32x32xf32> to vector<32x32xbf16>
    %38 = arith.truncf %36 : vector<32x128xf32> to vector<32x128xbf16>
    %cst_22 = arith.constant dense<0.000000e+00> : vector<32x128xf32>
    %39 = tpu.matmul %37, %38, %cst_22 {dimension_numbers = #tpu.dot_dimension_numbers<[1], [0], [0], [1], [0, 0, 1, 1], [], []>} : vector<32x32xbf16>, vector<32x128xbf16>, vector<32x128xf32> -> vector<32x128xf32>
    %40 = arith.addf %35, %39 : vector<32x128xf32>
    %41 = math.tanh %40 : vector<32x128xf32>
    %42 = math.exp %41 : vector<32x128xf32>
    %43 = arith.truncf %42 : vector<32x128xf32> to vector<32x128xbf16>
    %44 = arith.truncf %0 : vector<128x128xf32> to vector<128x128xbf16>
    %cst_23 = arith.constant dense<0.000000e+00> : vector<32x128xf32>
    %45 = tpu.matmul %43, %44, %cst_23 {dimension_numbers = #tpu.dot_dimension_numbers<[1], [0], [0], [1], [0, 0, 1, 1], [], []>} : vector<32x128xbf16>, vector<128x128xbf16>, vector<32x128xf32> -> vector<32x128xf32>
    %46 = tpu.reciprocal %45 {approx = true} : vector<32x128xf32> -> vector<32x128xf32>
    %47 = arith.mulf %42, %46 : vector<32x128xf32>
    %c0_24 = arith.constant 0 : index
    %c0_25 = arith.constant 0 : index
    %48 = vector.load %arg2[%c0_24, %c0_25] : memref<50x128xf32, #tpu.memory_space<vmem>>, vector<32x128xf32>
    tpu.vector_store %arg2[%c0_24, %c0_25], %47 {strides = array<i32>} : memref<50x128xf32, #tpu.memory_space<vmem>>, vector<32x128xf32>,
    %49 = vector.extract_strided_slice %15 {offsets = [0, 0], sizes = [16, 32], strides = [1, 1]} : vector<32x32xf32> to vector<16x32xf32>
    %50 = arith.truncf %1 : vector<128x16xf32> to vector<128x16xbf16>
    %51 = arith.truncf %49 : vector<16x32xf32> to vector<16x32xbf16>
    %cst_26 = arith.constant dense<0.000000e+00> : vector<128x32xf32>
    %52 = tpu.matmul %50, %51, %cst_26 {dimension_numbers = #tpu.dot_dimension_numbers<[1], [0], [0], [1], [0, 0, 1, 1], [], []>} : vector<128x16xbf16>, vector<16x32xbf16>, vector<128x32xf32> -> vector<128x32xf32>
    %53 = arith.mulf %52, %2 : vector<128x32xf32>
    %54 = vector.extract_strided_slice %47 {offsets = [0, 0], sizes = [16, 128], strides = [1, 1]} : vector<32x128xf32> to vector<16x128xf32>
    %55 = arith.truncf %54 : vector<16x128xf32> to vector<16x128xbf16>
    %56 = arith.truncf %53 : vector<128x32xf32> to vector<128x32xbf16>
    %cst_27 = arith.constant dense<0.000000e+00> : vector<16x32xf32>
    %57 = tpu.matmul %55, %56, %cst_27 {dimension_numbers = #tpu.dot_dimension_numbers<[1], [0], [0], [1], [0, 0, 1, 1], [], []>} : vector<16x128xbf16>, vector<128x32xbf16>, vector<16x32xf32> -> vector<16x32xf32>
    %58 = vector.extract_strided_slice %15 {offsets = [16, 0], sizes = [16, 32], strides = [1, 1]} : vector<32x32xf32> to vector<16x32xf32>
    %59 = arith.truncf %1 : vector<128x16xf32> to vector<128x16xbf16>
    %60 = arith.truncf %58 : vector<16x32xf32> to vector<16x32xbf16>
    %cst_28 = arith.constant dense<0.000000e+00> : vector<128x32xf32>
    %61 = tpu.matmul %59, %60, %cst_28 {dimension_numbers = #tpu.dot_dimension_numbers<[1], [0], [0], [1], [0, 0, 1, 1], [], []>} : vector<128x16xbf16>, vector<16x32xbf16>, vector<128x32xf32> -> vector<128x32xf32>
    %62 = arith.mulf %61, %2 : vector<128x32xf32>
    %63 = vector.extract_strided_slice %47 {offsets = [16, 0], sizes = [16, 128], strides = [1, 1]} : vector<32x128xf32> to vector<16x128xf32>
    %64 = arith.truncf %63 : vector<16x128xf32> to vector<16x128xbf16>
    %65 = arith.truncf %62 : vector<128x32xf32> to vector<128x32xbf16>
    %cst_29 = arith.constant dense<0.000000e+00> : vector<16x32xf32>
    %66 = tpu.matmul %64, %65, %cst_29 {dimension_numbers = #tpu.dot_dimension_numbers<[1], [0], [0], [1], [0, 0, 1, 1], [], []>} : vector<16x128xbf16>, vector<128x32xbf16>, vector<16x32xf32> -> vector<16x32xf32>
    %67 = tpu.concatenate %57, %66 in 0 : vector<16x32xf32>, vector<16x32xf32> -> vector<32x32xf32>
    %68 = arith.truncf %67 : vector<32x32xf32> to vector<32x32xbf16>
    %69 = arith.truncf %27 : vector<32x32xf32> to vector<32x32xbf16>
    %cst_30 = arith.constant dense<0.000000e+00> : vector<32x32xf32>
    %70 = tpu.matmul %68, %69, %cst_30 {dimension_numbers = #tpu.dot_dimension_numbers<[1], [0], [0], [1], [0, 0, 1, 1], [], []>} : vector<32x32xbf16>, vector<32x32xbf16>, vector<32x32xf32> -> vector<32x32xf32>
    %71 = vector.broadcast %28 : vector<1x32xf32> to vector<32x32xf32>
    %72 = arith.addf %70, %71 : vector<32x32xf32>
    %c288 = arith.constant 288 : index
    %c0_31 = arith.constant 0 : index
    %73 = vector.load %arg1[%c288, %c0_31] : memref<1176x128xf32, #tpu.memory_space<vmem>>, vector<32x32xf32>
    %c320 = arith.constant 320 : index
    %c0_32 = arith.constant 0 : index
    %74 = vector.load %arg1[%c320, %c0_32] : memref<1176x128xf32, #tpu.memory_space<vmem>>, vector<1x32xf32>
    %c328 = arith.constant 328 : index
    %c0_33 = arith.constant 0 : index
    %75 = vector.load %arg1[%c328, %c0_33] : memref<1176x128xf32, #tpu.memory_space<vmem>>, vector<32x32xf32>
    %c360 = arith.constant 360 : index
    %c0_34 = arith.constant 0 : index
    %76 = vector.load %arg1[%c360, %c0_34] : memref<1176x128xf32, #tpu.memory_space<vmem>>, vector<1x32xf32>
    %77 = arith.truncf %72 : vector<32x32xf32> to vector<32x32xbf16>
    %78 = arith.truncf %73 : vector<32x32xf32> to vector<32x32xbf16>
    %cst_35 = arith.constant dense<0.000000e+00> : vector<32x32xf32>
    %79 = tpu.matmul %77, %78, %cst_35 {dimension_numbers = #tpu.dot_dimension_numbers<[1], [0], [0], [1], [0, 0, 1, 1], [], []>} : vector<32x32xbf16>, vector<32x32xbf16>, vector<32x32xf32> -> vector<32x32xf32>
    %80 = vector.broadcast %74 : vector<1x32xf32> to vector<32x32xf32>
    %81 = arith.addf %79, %80 : vector<32x32xf32>
    %cst_36 = arith.constant 0.000000e+00 : f32
    %82 = vector.broadcast %cst_36 : f32 to vector<32x32xf32>
    %83 = arith.maximumf %81, %82 : vector<32x32xf32>
    %84 = arith.truncf %83 : vector<32x32xf32> to vector<32x32xbf16>
    %85 = arith.truncf %75 : vector<32x32xf32> to vector<32x32xbf16>
    %cst_37 = arith.constant dense<0.000000e+00> : vector<32x32xf32>
    %86 = tpu.matmul %84, %85, %cst_37 {dimension_numbers = #tpu.dot_dimension_numbers<[1], [0], [0], [1], [0, 0, 1, 1], [], []>} : vector<32x32xbf16>, vector<32x32xbf16>, vector<32x32xf32> -> vector<32x32xf32>
    %87 = vector.broadcast %76 : vector<1x32xf32> to vector<32x32xf32>
    %88 = arith.addf %86, %87 : vector<32x32xf32>
    %c144 = arith.constant 144 : index
    %c0_38 = arith.constant 0 : index
    %89 = vector.load %arg1[%c144, %c0_38] : memref<1176x128xf32, #tpu.memory_space<vmem>>, vector<32x128xf32>
    %c176 = arith.constant 176 : index
    %c0_39 = arith.constant 0 : index
    %90 = vector.load %arg1[%c176, %c0_39] : memref<1176x128xf32, #tpu.memory_space<vmem>>, vector<32x128xf32>
    %c248 = arith.constant 248 : index
    %c0_40 = arith.constant 0 : index
    %91 = vector.load %arg1[%c248, %c0_40] : memref<1176x128xf32, #tpu.memory_space<vmem>>, vector<32x32xf32>
    %c280 = arith.constant 280 : index
    %c0_41 = arith.constant 0 : index
    %92 = vector.load %arg1[%c280, %c0_41] : memref<1176x128xf32, #tpu.memory_space<vmem>>, vector<1x32xf32>
    %c1144 = arith.constant 1144 : index
    %c0_42 = arith.constant 0 : index
    %93 = vector.load %arg1[%c1144, %c0_42] : memref<1176x128xf32, #tpu.memory_space<vmem>>, vector<16x32xf32>
    %94 = arith.truncf %17 : vector<32x32xf32> to vector<32x32xbf16>
    %95 = arith.truncf %89 : vector<32x128xf32> to vector<32x128xbf16>
    %cst_43 = arith.constant dense<0.000000e+00> : vector<32x128xf32>
    %96 = tpu.matmul %94, %95, %cst_43 {dimension_numbers = #tpu.dot_dimension_numbers<[1], [0], [0], [1], [0, 0, 1, 1], [], []>} : vector<32x32xbf16>, vector<32x128xbf16>, vector<32x128xf32> -> vector<32x128xf32>
    %97 = arith.truncf %24 : vector<16x32xf32> to vector<16x32xbf16>
    %98 = arith.truncf %90 : vector<32x128xf32> to vector<32x128xbf16>
    %cst_44 = arith.constant dense<0.000000e+00> : vector<16x128xf32>
    %99 = tpu.matmul %97, %98, %cst_44 {dimension_numbers = #tpu.dot_dimension_numbers<[1], [0], [0], [1], [0, 0, 1, 1], [], []>} : vector<16x32xbf16>, vector<32x128xbf16>, vector<16x128xf32> -> vector<16x128xf32>
    %100 = arith.mulf %96, %3 : vector<32x128xf32>
    %101 = arith.truncf %93 : vector<16x32xf32> to vector<16x32xbf16>
    %102 = arith.truncf %100 : vector<32x128xf32> to vector<32x128xbf16>
    %cst_45 = arith.constant dense<0.000000e+00> : vector<16x128xf32>
    %103 = tpu.matmul %101, %102, %cst_45 {dimension_numbers = #tpu.dot_dimension_numbers<[1], [0], [0], [1], [0, 0, 1, 1], [], []>} : vector<16x32xbf16>, vector<32x128xbf16>, vector<16x128xf32> -> vector<16x128xf32>
    %104 = arith.addf %99, %103 : vector<16x128xf32>
    %105 = math.tanh %104 : vector<16x128xf32>
    %106 = math.exp %105 : vector<16x128xf32>
    %107 = arith.truncf %106 : vector<16x128xf32> to vector<16x128xbf16>
    %108 = arith.truncf %0 : vector<128x128xf32> to vector<128x128xbf16>
    %cst_46 = arith.constant dense<0.000000e+00> : vector<16x128xf32>
    %109 = tpu.matmul %107, %108, %cst_46 {dimension_numbers = #tpu.dot_dimension_numbers<[1], [0], [0], [1], [0, 0, 1, 1], [], []>} : vector<16x128xbf16>, vector<128x128xbf16>, vector<16x128xf32> -> vector<16x128xf32>
    %110 = tpu.reciprocal %109 {approx = true} : vector<16x128xf32> -> vector<16x128xf32>
    %111 = arith.mulf %106, %110 : vector<16x128xf32>
    %c32_47 = arith.constant 32 : index
    %c0_48 = arith.constant 0 : index
    %112 = vector.load %arg2[%c32_47, %c0_48] : memref<50x128xf32, #tpu.memory_space<vmem>>, vector<16x128xf32>
    tpu.vector_store %arg2[%c32_47, %c0_48], %111 {strides = array<i32>} : memref<50x128xf32, #tpu.memory_space<vmem>>, vector<16x128xf32>,
    %113 = vector.extract_strided_slice %17 {offsets = [0, 0], sizes = [16, 32], strides = [1, 1]} : vector<32x32xf32> to vector<16x32xf32>
    %114 = arith.truncf %1 : vector<128x16xf32> to vector<128x16xbf16>
    %115 = arith.truncf %113 : vector<16x32xf32> to vector<16x32xbf16>
    %cst_49 = arith.constant dense<0.000000e+00> : vector<128x32xf32>
    %116 = tpu.matmul %114, %115, %cst_49 {dimension_numbers = #tpu.dot_dimension_numbers<[1], [0], [0], [1], [0, 0, 1, 1], [], []>} : vector<128x16xbf16>, vector<16x32xbf16>, vector<128x32xf32> -> vector<128x32xf32>
    %117 = arith.mulf %116, %2 : vector<128x32xf32>
    %118 = vector.extract_strided_slice %111 {offsets = [0, 0], sizes = [8, 128], strides = [1, 1]} : vector<16x128xf32> to vector<8x128xf32>
    %119 = arith.truncf %118 : vector<8x128xf32> to vector<8x128xbf16>
    %120 = arith.truncf %117 : vector<128x32xf32> to vector<128x32xbf16>
    %cst_50 = arith.constant dense<0.000000e+00> : vector<8x32xf32>
    %121 = tpu.matmul %119, %120, %cst_50 {dimension_numbers = #tpu.dot_dimension_numbers<[1], [0], [0], [1], [0, 0, 1, 1], [], []>} : vector<8x128xbf16>, vector<128x32xbf16>, vector<8x32xf32> -> vector<8x32xf32>
    %122 = vector.extract_strided_slice %17 {offsets = [16, 0], sizes = [16, 32], strides = [1, 1]} : vector<32x32xf32> to vector<16x32xf32>
    %123 = arith.truncf %1 : vector<128x16xf32> to vector<128x16xbf16>
    %124 = arith.truncf %122 : vector<16x32xf32> to vector<16x32xbf16>
    %cst_51 = arith.constant dense<0.000000e+00> : vector<128x32xf32>
    %125 = tpu.matmul %123, %124, %cst_51 {dimension_numbers = #tpu.dot_dimension_numbers<[1], [0], [0], [1], [0, 0, 1, 1], [], []>} : vector<128x16xbf16>, vector<16x32xbf16>, vector<128x32xf32> -> vector<128x32xf32>
    %126 = arith.mulf %125, %2 : vector<128x32xf32>
    %127 = vector.extract_strided_slice %111 {offsets = [8, 0], sizes = [8, 128], strides = [1, 1]} : vector<16x128xf32> to vector<8x128xf32>
    %128 = arith.truncf %127 : vector<8x128xf32> to vector<8x128xbf16>
    %129 = arith.truncf %126 : vector<128x32xf32> to vector<128x32xbf16>
    %cst_52 = arith.constant dense<0.000000e+00> : vector<8x32xf32>
    %130 = tpu.matmul %128, %129, %cst_52 {dimension_numbers = #tpu.dot_dimension_numbers<[1], [0], [0], [1], [0, 0, 1, 1], [], []>} : vector<8x128xbf16>, vector<128x32xbf16>, vector<8x32xf32> -> vector<8x32xf32>
    %131 = tpu.concatenate %121, %130 in 0 : vector<8x32xf32>, vector<8x32xf32> -> vector<16x32xf32>
    %132 = arith.truncf %131 : vector<16x32xf32> to vector<16x32xbf16>
    %133 = arith.truncf %91 : vector<32x32xf32> to vector<32x32xbf16>
    %cst_53 = arith.constant dense<0.000000e+00> : vector<16x32xf32>
    %134 = tpu.matmul %132, %133, %cst_53 {dimension_numbers = #tpu.dot_dimension_numbers<[1], [0], [0], [1], [0, 0, 1, 1], [], []>} : vector<16x32xbf16>, vector<32x32xbf16>, vector<16x32xf32> -> vector<16x32xf32>
    %135 = vector.broadcast %92 : vector<1x32xf32> to vector<16x32xf32>
    %136 = arith.addf %134, %135 : vector<16x32xf32>
    %c368 = arith.constant 368 : index
    %c0_54 = arith.constant 0 : index
    %137 = vector.load %arg1[%c368, %c0_54] : memref<1176x128xf32, #tpu.memory_space<vmem>>, vector<32x32xf32>
    %c400 = arith.constant 400 : index
    %c0_55 = arith.constant 0 : index
    %138 = vector.load %arg1[%c400, %c0_55] : memref<1176x128xf32, #tpu.memory_space<vmem>>, vector<1x32xf32>
    %c408 = arith.constant 408 : index
    %c0_56 = arith.constant 0 : index
    %139 = vector.load %arg1[%c408, %c0_56] : memref<1176x128xf32, #tpu.memory_space<vmem>>, vector<32x32xf32>
    %c440 = arith.constant 440 : index
    %c0_57 = arith.constant 0 : index
    %140 = vector.load %arg1[%c440, %c0_57] : memref<1176x128xf32, #tpu.memory_space<vmem>>, vector<1x32xf32>
    %141 = arith.truncf %136 : vector<16x32xf32> to vector<16x32xbf16>
    %142 = arith.truncf %137 : vector<32x32xf32> to vector<32x32xbf16>
    %cst_58 = arith.constant dense<0.000000e+00> : vector<16x32xf32>
    %143 = tpu.matmul %141, %142, %cst_58 {dimension_numbers = #tpu.dot_dimension_numbers<[1], [0], [0], [1], [0, 0, 1, 1], [], []>} : vector<16x32xbf16>, vector<32x32xbf16>, vector<16x32xf32> -> vector<16x32xf32>
    %144 = vector.broadcast %138 : vector<1x32xf32> to vector<16x32xf32>
    %145 = arith.addf %143, %144 : vector<16x32xf32>
    %cst_59 = arith.constant 0.000000e+00 : f32
    %146 = vector.broadcast %cst_59 : f32 to vector<16x32xf32>
    %147 = arith.maximumf %145, %146 : vector<16x32xf32>
    %148 = arith.truncf %147 : vector<16x32xf32> to vector<16x32xbf16>
    %149 = arith.truncf %139 : vector<32x32xf32> to vector<32x32xbf16>
    %cst_60 = arith.constant dense<0.000000e+00> : vector<16x32xf32>
    %150 = tpu.matmul %148, %149, %cst_60 {dimension_numbers = #tpu.dot_dimension_numbers<[1], [0], [0], [1], [0, 0, 1, 1], [], []>} : vector<16x32xbf16>, vector<32x32xbf16>, vector<16x32xf32> -> vector<16x32xf32>
    %151 = vector.broadcast %140 : vector<1x32xf32> to vector<16x32xf32>
    %152 = arith.addf %150, %151 : vector<16x32xf32>
    %c448 = arith.constant 448 : index
    %c0_61 = arith.constant 0 : index
    %153 = vector.load %arg1[%c448, %c0_61] : memref<1176x128xf32, #tpu.memory_space<vmem>>, vector<32x32xf32>
    %c480 = arith.constant 480 : index
    %c0_62 = arith.constant 0 : index
    %154 = vector.load %arg1[%c480, %c0_62] : memref<1176x128xf32, #tpu.memory_space<vmem>>, vector<32x2xf32>
    %c512 = arith.constant 512 : index
    %c0_63 = arith.constant 0 : index
    %155 = vector.load %arg1[%c512, %c0_63] : memref<1176x128xf32, #tpu.memory_space<vmem>>, vector<1x32xf32>
    %156 = arith.truncf %88 : vector<32x32xf32> to vector<32x32xbf16>
    %157 = arith.truncf %153 : vector<32x32xf32> to vector<32x32xbf16>
    %cst_64 = arith.constant dense<0.000000e+00> : vector<32x32xf32>
    %158 = tpu.matmul %156, %157, %cst_64 {dimension_numbers = #tpu.dot_dimension_numbers<[1], [0], [0], [1], [0, 0, 1, 1], [], []>} : vector<32x32xbf16>, vector<32x32xbf16>, vector<32x32xf32> -> vector<32x32xf32>
    %159 = arith.truncf %158 : vector<32x32xf32> to vector<32x32xbf16>
    %160 = arith.truncf %154 : vector<32x2xf32> to vector<32x2xbf16>
    %cst_65 = arith.constant dense<0.000000e+00> : vector<32x2xf32>
    %161 = tpu.matmul %159, %160, %cst_65 {dimension_numbers = #tpu.dot_dimension_numbers<[1], [0], [0], [1], [0, 0, 1, 1], [], []>} : vector<32x32xbf16>, vector<32x2xbf16>, vector<32x2xf32> -> vector<32x2xf32>
    %162 = vector.extract_strided_slice %158 {offsets = [0, 0], sizes = [16, 32], strides = [1, 1]} : vector<32x32xf32> to vector<16x32xf32>
    %163 = vector.extract_strided_slice %161 {offsets = [0, 0], sizes = [16, 2], strides = [1, 1]} : vector<32x2xf32> to vector<16x2xf32>
    %164 = vector.extract_strided_slice %163 {offsets = [0, 0], sizes = [16, 1], strides = [1, 1]} : vector<16x2xf32> to vector<16x1xf32>
    %165 = vector.broadcast %164 : vector<16x1xf32> to vector<16x16xf32>
    %166 = arith.mulf %165, %4 : vector<16x16xf32>
    %cst_66 = arith.constant dense<0.000000e+00> : vector<16xf32>
    %167 = vector.multi_reduction <add>, %166, %cst_66 [0] : vector<16x16xf32> to vector<16xf32>
    %168 = vector.shape_cast %167 : vector<16xf32> to vector<1x16xf32>
    %169 = vector.extract_strided_slice %163 {offsets = [0, 1], sizes = [16, 1], strides = [1, 1]} : vector<16x2xf32> to vector<16x1xf32>
    %170 = vector.broadcast %169 : vector<16x1xf32> to vector<16x16xf32>
    %171 = vector.broadcast %168 : vector<1x16xf32> to vector<16x16xf32>
    %172 = arith.addf %170, %171 : vector<16x16xf32>
    %cst_67 = arith.constant 0.000000e+00 : f32
    %173 = vector.broadcast %cst_67 : f32 to vector<16x16xf32>
    %174 = arith.cmpf ogt, %172, %173 : vector<16x16xf32>
    %cst_68 = arith.constant 2.000000e-01 : f32
    %175 = vector.broadcast %cst_68 : f32 to vector<16x16xf32>
    %176 = arith.mulf %175, %172 : vector<16x16xf32>
    %177 = arith.select %174, %172, %176 : vector<16x16xi1>, vector<16x16xf32>
    %178 = vector.extract_strided_slice %5 {offsets = [0, 0], sizes = [16, 16], strides = [1, 1]} : vector<32x16xf32> to vector<16x16xf32>
    %179 = arith.addf %177, %178 : vector<16x16xf32>
    %cst_69 = arith.constant dense<0xFF800000> : vector<16xf32>
    %180 = vector.multi_reduction <maximumf>, %179, %cst_69 [1] : vector<16x16xf32> to vector<16xf32>
    %181 = vector.shape_cast %180 : vector<16xf32> to vector<16x1xf32>
    %182 = vector.broadcast %181 : vector<16x1xf32> to vector<16x16xf32>
    %183 = arith.subf %179, %182 : vector<16x16xf32>
    %184 = math.exp %183 : vector<16x16xf32>
    %cst_70 = arith.constant dense<0.000000e+00> : vector<16xf32>
    %185 = vector.multi_reduction <add>, %184, %cst_70 [1] : vector<16x16xf32> to vector<16xf32>
    %186 = vector.shape_cast %185 : vector<16xf32> to vector<16x1xf32>
    %cst_71 = arith.constant 1.000000e-30 : f32
    %187 = vector.broadcast %cst_71 : f32 to vector<16x1xf32>
    %188 = arith.maximumf %186, %187 : vector<16x1xf32>
    %189 = tpu.reciprocal %188 {approx = true} : vector<16x1xf32> -> vector<16x1xf32>
    %190 = vector.broadcast %189 : vector<16x1xf32> to vector<16x16xf32>
    %191 = arith.mulf %184, %190 : vector<16x16xf32>
    %192 = arith.truncf %191 : vector<16x16xf32> to vector<16x16xbf16>
    %193 = arith.truncf %162 : vector<16x32xf32> to vector<16x32xbf16>
    %cst_72 = arith.constant dense<0.000000e+00> : vector<16x32xf32>
    %194 = tpu.matmul %192, %193, %cst_72 {dimension_numbers = #tpu.dot_dimension_numbers<[1], [0], [0], [1], [0, 0, 1, 1], [], []>} : vector<16x16xbf16>, vector<16x32xbf16>, vector<16x32xf32> -> vector<16x32xf32>
    %195 = vector.broadcast %155 : vector<1x32xf32> to vector<16x32xf32>
    %196 = arith.addf %194, %195 : vector<16x32xf32>
    %cst_73 = arith.constant 0.000000e+00 : f32
    %197 = vector.broadcast %cst_73 : f32 to vector<16x32xf32>
    %198 = arith.maximumf %196, %197 : vector<16x32xf32>
    %199 = vector.extract_strided_slice %158 {offsets = [16, 0], sizes = [16, 32], strides = [1, 1]} : vector<32x32xf32> to vector<16x32xf32>
    %200 = vector.extract_strided_slice %161 {offsets = [16, 0], sizes = [16, 2], strides = [1, 1]} : vector<32x2xf32> to vector<16x2xf32>
    %201 = vector.extract_strided_slice %200 {offsets = [0, 0], sizes = [16, 1], strides = [1, 1]} : vector<16x2xf32> to vector<16x1xf32>
    %202 = vector.broadcast %201 : vector<16x1xf32> to vector<16x16xf32>
    %203 = arith.mulf %202, %4 : vector<16x16xf32>
    %cst_74 = arith.constant dense<0.000000e+00> : vector<16xf32>
    %204 = vector.multi_reduction <add>, %203, %cst_74 [0] : vector<16x16xf32> to vector<16xf32>
    %205 = vector.shape_cast %204 : vector<16xf32> to vector<1x16xf32>
    %206 = vector.extract_strided_slice %200 {offsets = [0, 1], sizes = [16, 1], strides = [1, 1]} : vector<16x2xf32> to vector<16x1xf32>
    %207 = vector.broadcast %206 : vector<16x1xf32> to vector<16x16xf32>
    %208 = vector.broadcast %205 : vector<1x16xf32> to vector<16x16xf32>
    %209 = arith.addf %207, %208 : vector<16x16xf32>
    %cst_75 = arith.constant 0.000000e+00 : f32
    %210 = vector.broadcast %cst_75 : f32 to vector<16x16xf32>
    %211 = arith.cmpf ogt, %209, %210 : vector<16x16xf32>
    %cst_76 = arith.constant 2.000000e-01 : f32
    %212 = vector.broadcast %cst_76 : f32 to vector<16x16xf32>
    %213 = arith.mulf %212, %209 : vector<16x16xf32>
    %214 = arith.select %211, %209, %213 : vector<16x16xi1>, vector<16x16xf32>
    %215 = vector.extract_strided_slice %5 {offsets = [16, 0], sizes = [16, 16], strides = [1, 1]} : vector<32x16xf32> to vector<16x16xf32>
    %216 = arith.addf %214, %215 : vector<16x16xf32>
    %cst_77 = arith.constant dense<0xFF800000> : vector<16xf32>
    %217 = vector.multi_reduction <maximumf>, %216, %cst_77 [1] : vector<16x16xf32> to vector<16xf32>
    %218 = vector.shape_cast %217 : vector<16xf32> to vector<16x1xf32>
    %219 = vector.broadcast %218 : vector<16x1xf32> to vector<16x16xf32>
    %220 = arith.subf %216, %219 : vector<16x16xf32>
    %221 = math.exp %220 : vector<16x16xf32>
    %cst_78 = arith.constant dense<0.000000e+00> : vector<16xf32>
    %222 = vector.multi_reduction <add>, %221, %cst_78 [1] : vector<16x16xf32> to vector<16xf32>
    %223 = vector.shape_cast %222 : vector<16xf32> to vector<16x1xf32>
    %cst_79 = arith.constant 1.000000e-30 : f32
    %224 = vector.broadcast %cst_79 : f32 to vector<16x1xf32>
    %225 = arith.maximumf %223, %224 : vector<16x1xf32>
    %226 = tpu.reciprocal %225 {approx = true} : vector<16x1xf32> -> vector<16x1xf32>
    %227 = vector.broadcast %226 : vector<16x1xf32> to vector<16x16xf32>
    %228 = arith.mulf %221, %227 : vector<16x16xf32>
    %229 = arith.truncf %228 : vector<16x16xf32> to vector<16x16xbf16>
    %230 = arith.truncf %199 : vector<16x32xf32> to vector<16x32xbf16>
    %cst_80 = arith.constant dense<0.000000e+00> : vector<16x32xf32>
    %231 = tpu.matmul %229, %230, %cst_80 {dimension_numbers = #tpu.dot_dimension_numbers<[1], [0], [0], [1], [0, 0, 1, 1], [], []>} : vector<16x16xbf16>, vector<16x32xbf16>, vector<16x32xf32> -> vector<16x32xf32>
    %232 = vector.broadcast %155 : vector<1x32xf32> to vector<16x32xf32>
    %233 = arith.addf %231, %232 : vector<16x32xf32>
    %cst_81 = arith.constant 0.000000e+00 : f32
    %234 = vector.broadcast %cst_81 : f32 to vector<16x32xf32>
    %235 = arith.maximumf %233, %234 : vector<16x32xf32>
    %236 = tpu.concatenate %198, %235 in 0 : vector<16x32xf32>, vector<16x32xf32> -> vector<32x32xf32>
    %c520 = arith.constant 520 : index
    %c0_82 = arith.constant 0 : index
    %237 = vector.load %arg1[%c520, %c0_82] : memref<1176x128xf32, #tpu.memory_space<vmem>>, vector<32x32xf32>
    %c552 = arith.constant 552 : index
    %c0_83 = arith.constant 0 : index
    %238 = vector.load %arg1[%c552, %c0_83] : memref<1176x128xf32, #tpu.memory_space<vmem>>, vector<32x2xf32>
    %c584 = arith.constant 584 : index
    %c0_84 = arith.constant 0 : index
    %239 = vector.load %arg1[%c584, %c0_84] : memref<1176x128xf32, #tpu.memory_space<vmem>>, vector<1x32xf32>
    %240 = arith.truncf %236 : vector<32x32xf32> to vector<32x32xbf16>
    %241 = arith.truncf %237 : vector<32x32xf32> to vector<32x32xbf16>
    %cst_85 = arith.constant dense<0.000000e+00> : vector<32x32xf32>
    %242 = tpu.matmul %240, %241, %cst_85 {dimension_numbers = #tpu.dot_dimension_numbers<[1], [0], [0], [1], [0, 0, 1, 1], [], []>} : vector<32x32xbf16>, vector<32x32xbf16>, vector<32x32xf32> -> vector<32x32xf32>
    %243 = arith.truncf %242 : vector<32x32xf32> to vector<32x32xbf16>
    %244 = arith.truncf %238 : vector<32x2xf32> to vector<32x2xbf16>
    %cst_86 = arith.constant dense<0.000000e+00> : vector<32x2xf32>
    %245 = tpu.matmul %243, %244, %cst_86 {dimension_numbers = #tpu.dot_dimension_numbers<[1], [0], [0], [1], [0, 0, 1, 1], [], []>} : vector<32x32xbf16>, vector<32x2xbf16>, vector<32x2xf32> -> vector<32x2xf32>
    %246 = vector.extract_strided_slice %242 {offsets = [0, 0], sizes = [16, 32], strides = [1, 1]} : vector<32x32xf32> to vector<16x32xf32>
    %247 = vector.extract_strided_slice %245 {offsets = [0, 0], sizes = [16, 2], strides = [1, 1]} : vector<32x2xf32> to vector<16x2xf32>
    %248 = vector.extract_strided_slice %247 {offsets = [0, 0], sizes = [16, 1], strides = [1, 1]} : vector<16x2xf32> to vector<16x1xf32>
    %249 = vector.broadcast %248 : vector<16x1xf32> to vector<16x16xf32>
    %250 = arith.mulf %249, %4 : vector<16x16xf32>
    %cst_87 = arith.constant dense<0.000000e+00> : vector<16xf32>
    %251 = vector.multi_reduction <add>, %250, %cst_87 [0] : vector<16x16xf32> to vector<16xf32>
    %252 = vector.shape_cast %251 : vector<16xf32> to vector<1x16xf32>
    %253 = vector.extract_strided_slice %247 {offsets = [0, 1], sizes = [16, 1], strides = [1, 1]} : vector<16x2xf32> to vector<16x1xf32>
    %254 = vector.broadcast %253 : vector<16x1xf32> to vector<16x16xf32>
    %255 = vector.broadcast %252 : vector<1x16xf32> to vector<16x16xf32>
    %256 = arith.addf %254, %255 : vector<16x16xf32>
    %cst_88 = arith.constant 0.000000e+00 : f32
    %257 = vector.broadcast %cst_88 : f32 to vector<16x16xf32>
    %258 = arith.cmpf ogt, %256, %257 : vector<16x16xf32>
    %cst_89 = arith.constant 2.000000e-01 : f32
    %259 = vector.broadcast %cst_89 : f32 to vector<16x16xf32>
    %260 = arith.mulf %259, %256 : vector<16x16xf32>
    %261 = arith.select %258, %256, %260 : vector<16x16xi1>, vector<16x16xf32>
    %262 = vector.extract_strided_slice %5 {offsets = [0, 0], sizes = [16, 16], strides = [1, 1]} : vector<32x16xf32> to vector<16x16xf32>
    %263 = arith.addf %261, %262 : vector<16x16xf32>
    %cst_90 = arith.constant dense<0xFF800000> : vector<16xf32>
    %264 = vector.multi_reduction <maximumf>, %263, %cst_90 [1] : vector<16x16xf32> to vector<16xf32>
    %265 = vector.shape_cast %264 : vector<16xf32> to vector<16x1xf32>
    %266 = vector.broadcast %265 : vector<16x1xf32> to vector<16x16xf32>
    %267 = arith.subf %263, %266 : vector<16x16xf32>
    %268 = math.exp %267 : vector<16x16xf32>
    %cst_91 = arith.constant dense<0.000000e+00> : vector<16xf32>
    %269 = vector.multi_reduction <add>, %268, %cst_91 [1] : vector<16x16xf32> to vector<16xf32>
    %270 = vector.shape_cast %269 : vector<16xf32> to vector<16x1xf32>
    %cst_92 = arith.constant 1.000000e-30 : f32
    %271 = vector.broadcast %cst_92 : f32 to vector<16x1xf32>
    %272 = arith.maximumf %270, %271 : vector<16x1xf32>
    %273 = tpu.reciprocal %272 {approx = true} : vector<16x1xf32> -> vector<16x1xf32>
    %274 = vector.broadcast %273 : vector<16x1xf32> to vector<16x16xf32>
    %275 = arith.mulf %268, %274 : vector<16x16xf32>
    %276 = arith.truncf %275 : vector<16x16xf32> to vector<16x16xbf16>
    %277 = arith.truncf %246 : vector<16x32xf32> to vector<16x32xbf16>
    %cst_93 = arith.constant dense<0.000000e+00> : vector<16x32xf32>
    %278 = tpu.matmul %276, %277, %cst_93 {dimension_numbers = #tpu.dot_dimension_numbers<[1], [0], [0], [1], [0, 0, 1, 1], [], []>} : vector<16x16xbf16>, vector<16x32xbf16>, vector<16x32xf32> -> vector<16x32xf32>
    %279 = vector.broadcast %239 : vector<1x32xf32> to vector<16x32xf32>
    %280 = arith.addf %278, %279 : vector<16x32xf32>
    %cst_94 = arith.constant 0.000000e+00 : f32
    %281 = vector.broadcast %cst_94 : f32 to vector<16x32xf32>
    %282 = arith.maximumf %280, %281 : vector<16x32xf32>
    %283 = vector.extract_strided_slice %242 {offsets = [16, 0], sizes = [16, 32], strides = [1, 1]} : vector<32x32xf32> to vector<16x32xf32>
    %284 = vector.extract_strided_slice %245 {offsets = [16, 0], sizes = [16, 2], strides = [1, 1]} : vector<32x2xf32> to vector<16x2xf32>
    %285 = vector.extract_strided_slice %284 {offsets = [0, 0], sizes = [16, 1], strides = [1, 1]} : vector<16x2xf32> to vector<16x1xf32>
    %286 = vector.broadcast %285 : vector<16x1xf32> to vector<16x16xf32>
    %287 = arith.mulf %286, %4 : vector<16x16xf32>
    %cst_95 = arith.constant dense<0.000000e+00> : vector<16xf32>
    %288 = vector.multi_reduction <add>, %287, %cst_95 [0] : vector<16x16xf32> to vector<16xf32>
    %289 = vector.shape_cast %288 : vector<16xf32> to vector<1x16xf32>
    %290 = vector.extract_strided_slice %284 {offsets = [0, 1], sizes = [16, 1], strides = [1, 1]} : vector<16x2xf32> to vector<16x1xf32>
    %291 = vector.broadcast %290 : vector<16x1xf32> to vector<16x16xf32>
    %292 = vector.broadcast %289 : vector<1x16xf32> to vector<16x16xf32>
    %293 = arith.addf %291, %292 : vector<16x16xf32>
    %cst_96 = arith.constant 0.000000e+00 : f32
    %294 = vector.broadcast %cst_96 : f32 to vector<16x16xf32>
    %295 = arith.cmpf ogt, %293, %294 : vector<16x16xf32>
    %cst_97 = arith.constant 2.000000e-01 : f32
    %296 = vector.broadcast %cst_97 : f32 to vector<16x16xf32>
    %297 = arith.mulf %296, %293 : vector<16x16xf32>
    %298 = arith.select %295, %293, %297 : vector<16x16xi1>, vector<16x16xf32>
    %299 = vector.extract_strided_slice %5 {offsets = [16, 0], sizes = [16, 16], strides = [1, 1]} : vector<32x16xf32> to vector<16x16xf32>
    %300 = arith.addf %298, %299 : vector<16x16xf32>
    %cst_98 = arith.constant dense<0xFF800000> : vector<16xf32>
    %301 = vector.multi_reduction <maximumf>, %300, %cst_98 [1] : vector<16x16xf32> to vector<16xf32>
    %302 = vector.shape_cast %301 : vector<16xf32> to vector<16x1xf32>
    %303 = vector.broadcast %302 : vector<16x1xf32> to vector<16x16xf32>
    %304 = arith.subf %300, %303 : vector<16x16xf32>
    %305 = math.exp %304 : vector<16x16xf32>
    %cst_99 = arith.constant dense<0.000000e+00> : vector<16xf32>
    %306 = vector.multi_reduction <add>, %305, %cst_99 [1] : vector<16x16xf32> to vector<16xf32>
    %307 = vector.shape_cast %306 : vector<16xf32> to vector<16x1xf32>
    %cst_100 = arith.constant 1.000000e-30 : f32
    %308 = vector.broadcast %cst_100 : f32 to vector<16x1xf32>
    %309 = arith.maximumf %307, %308 : vector<16x1xf32>
    %310 = tpu.reciprocal %309 {approx = true} : vector<16x1xf32> -> vector<16x1xf32>
    %311 = vector.broadcast %310 : vector<16x1xf32> to vector<16x16xf32>
    %312 = arith.mulf %305, %311 : vector<16x16xf32>
    %313 = arith.truncf %312 : vector<16x16xf32> to vector<16x16xbf16>
    %314 = arith.truncf %283 : vector<16x32xf32> to vector<16x32xbf16>
    %cst_101 = arith.constant dense<0.000000e+00> : vector<16x32xf32>
    %315 = tpu.matmul %313, %314, %cst_101 {dimension_numbers = #tpu.dot_dimension_numbers<[1], [0], [0], [1], [0, 0, 1, 1], [], []>} : vector<16x16xbf16>, vector<16x32xbf16>, vector<16x32xf32> -> vector<16x32xf32>
    %316 = vector.broadcast %239 : vector<1x32xf32> to vector<16x32xf32>
    %317 = arith.addf %315, %316 : vector<16x32xf32>
    %cst_102 = arith.constant 0.000000e+00 : f32
    %318 = vector.broadcast %cst_102 : f32 to vector<16x32xf32>
    %319 = arith.maximumf %317, %318 : vector<16x32xf32>
    %320 = tpu.concatenate %282, %319 in 0 : vector<16x32xf32>, vector<16x32xf32> -> vector<32x32xf32>
    %c592 = arith.constant 592 : index
    %c0_103 = arith.constant 0 : index
    %321 = vector.load %arg1[%c592, %c0_103] : memref<1176x128xf32, #tpu.memory_space<vmem>>, vector<32x128xf32>
    %322 = arith.truncf %320 : vector<32x32xf32> to vector<32x32xbf16>
    %323 = arith.truncf %321 : vector<32x128xf32> to vector<32x128xbf16>
    %cst_104 = arith.constant dense<0.000000e+00> : vector<32x128xf32>
    %324 = tpu.matmul %322, %323, %cst_104 {dimension_numbers = #tpu.dot_dimension_numbers<[1], [0], [0], [1], [0, 0, 1, 1], [], []>} : vector<32x32xbf16>, vector<32x128xbf16>, vector<32x128xf32> -> vector<32x128xf32>
    %c624 = arith.constant 624 : index
    %c0_105 = arith.constant 0 : index
    %325 = vector.load %arg1[%c624, %c0_105] : memref<1176x128xf32, #tpu.memory_space<vmem>>, vector<32x128xf32>
    %326 = arith.truncf %88 : vector<32x32xf32> to vector<32x32xbf16>
    %327 = arith.truncf %325 : vector<32x128xf32> to vector<32x128xbf16>
    %cst_106 = arith.constant dense<0.000000e+00> : vector<32x128xf32>
    %328 = tpu.matmul %326, %327, %cst_106 {dimension_numbers = #tpu.dot_dimension_numbers<[1], [0], [0], [1], [0, 0, 1, 1], [], []>} : vector<32x32xbf16>, vector<32x128xbf16>, vector<32x128xf32> -> vector<32x128xf32>
    %c656 = arith.constant 656 : index
    %c0_107 = arith.constant 0 : index
    %329 = vector.load %arg1[%c656, %c0_107] : memref<1176x128xf32, #tpu.memory_space<vmem>>, vector<32x128xf32>
    %330 = arith.truncf %152 : vector<16x32xf32> to vector<16x32xbf16>
    %331 = arith.truncf %329 : vector<32x128xf32> to vector<32x128xbf16>
    %cst_108 = arith.constant dense<0.000000e+00> : vector<16x128xf32>
    %332 = tpu.matmul %330, %331, %cst_108 {dimension_numbers = #tpu.dot_dimension_numbers<[1], [0], [0], [1], [0, 0, 1, 1], [], []>} : vector<16x32xbf16>, vector<32x128xbf16>, vector<16x128xf32> -> vector<16x128xf32>
    %333 = tpu.concatenate %324, %328, %332 in 0 : vector<32x128xf32>, vector<32x128xf32>, vector<16x128xf32> -> vector<80x128xf32>
    %c80_109 = arith.constant 80 : index
    %c0_110 = arith.constant 0 : index
    %334 = vector.load %arg0[%c80_109, %c0_110] : memref<88x128xf32, #tpu.memory_space<vmem>>, vector<2x80xf32>
    %335 = arith.truncf %334 : vector<2x80xf32> to vector<2x80xbf16>
    %336 = arith.truncf %333 : vector<80x128xf32> to vector<80x128xbf16>
    %cst_111 = arith.constant dense<0.000000e+00> : vector<2x128xf32>
    %337 = tpu.matmul %335, %336, %cst_111 {dimension_numbers = #tpu.dot_dimension_numbers<[1], [0], [0], [1], [0, 0, 1, 1], [], []>} : vector<2x80xbf16>, vector<80x128xbf16>, vector<2x128xf32> -> vector<2x128xf32>
    %c688 = arith.constant 688 : index
    %c0_112 = arith.constant 0 : index
    %338 = vector.load %arg1[%c688, %c0_112] : memref<1176x128xf32, #tpu.memory_space<vmem>>, vector<1x128xf32>
    %339 = vector.broadcast %338 : vector<1x128xf32> to vector<2x128xf32>
    %340 = arith.addf %337, %339 : vector<2x128xf32>
    %c48_113 = arith.constant 48 : index
    %c0_114 = arith.constant 0 : index
    %341 = vector.load %arg2[%c48_113, %c0_114] : memref<50x128xf32, #tpu.memory_space<vmem>>, vector<2x128xf32>
    tpu.vector_store %arg2[%c48_113, %c0_114], %340 {strides = array<i32>} : memref<50x128xf32, #tpu.memory_space<vmem>>, vector<2x128xf32>,
    return
  }
}

</mosaic_0001>

<llo_original>
// kernel: forward.1
$region0: #{forward.1}
  #allocation0 [shape = 'u32[]', space=smem, size = 0x4, offset = 0x4, fixed_abs, tag = 'smem constant byte address 0x4 - core index']
  #allocation1 [shape = 'u32[72,128]{1,0:T(1,128)}', space=vmem, size = 0x9000, scoped, tag = 'internal scratch']
  %s0 = inlined_call_operand.vmem [shape: f32[88,128], index: 0, kind: input, shape index: {}]
  %s1 = inlined_call_operand.hbm [shape: f32[1176,128], index: 1, kind: input, shape index: {}]
  %s2 = inlined_call_operand.vmem [shape: f32[50,128], index: 2, kind: output, shape index: {}]
  %s3 = sld [smem:[#allocation0]]
  $region22: #{forward.1} parent=0
    _
  %s5 = ssub.s32 1, %s3
  %s6 = scalar_select 0, %s5, %s3
  $region1: #{forward.1} parent=0
    #allocation2 [shape = 'u8[602112]{0}', space=vmem, size = 0x93000, scoped, tag = 'input window, operand 1, single buffered']
    #allocation3 [shape = 's32[1]{0}', space=sflag, size = 0x4, scoped, tag = 'scoped memory for forward.1']
    %7 = vsyncpa [#allocation3], 0
    // Predicated region
    $region2: #{forward.1} parent=1 // pred_check
      _
    $region3: #{forward.1} parent=1 // pred_check_branch
      %9 = sbr.rel (0) target = $region5
    $region4: #{forward.1} parent=1 // pred_region
      _
    $region5: #{forward.1} parent=1 // pred_fallthru
      _
    // Predicated region
    $region6: #{forward.1} parent=1 // pred_check
      _
    $region7: #{forward.1} parent=1 // pred_check_branch
      %11 = sbr.rel (0) target = $region9
    $region8: #{forward.1} parent=1 // pred_region
      %13 = vsyncadd [#allocation3], 0
      %s14 = sshll.u32 %s1, 4
      %s15 = int_to_ptr.hbm [resolvable:$true] %s14
      %s16 = sshll.u32 [#allocation2], 4
      %s17 = int_to_ptr.vmem [resolvable:$true] %s16
      %22 = dma.hbm_to_vmem [thread:$0]  %s15, 18816, %s17, [#allocation3], 128, 128, 8
    $region9: #{forward.1} parent=1 // pred_fallthru
      _
    // Predicated region
    $region10: #{forward.1} parent=1 // pred_check
      _
    $region11: #{forward.1} parent=1 // pred_check_branch
      %24 = sbr.rel (0) target = $region13
    $region12: #{forward.1} parent=1 // pred_region
      %26 = dma.done [#allocation3], 18816
    $region13: #{forward.1} parent=1 // pred_fallthru
      _
    %v28 = vld [vmem:[#allocation2 + $0x2b8] sm:$0xff]
    %v29 = vld [vmem:[#allocation2 + $0x2c0] sm:$0xff]
    %v30 = vld [vmem:[#allocation2 + $0x2c8] sm:$0xff]
    %v31 = vld [vmem:[#allocation2 + $0x2d0] sm:$0xff]
    %v32 = vld [vmem:[#allocation2 + $0x2d8] sm:$0xff]
    %v33 = vld [vmem:[#allocation2 + $0x2e0] sm:$0xff]
    %v34 = vld [vmem:[#allocation2 + $0x2e8] sm:$0xff]
    %v35 = vld [vmem:[#allocation2 + $0x2f0] sm:$0xff]
    %v36 = vld [vmem:[#allocation2 + $0x2f8] sm:$0xff]
    %v37 = vld [vmem:[#allocation2 + $0x300] sm:$0xff]
    %v38 = vld [vmem:[#allocation2 + $0x308] sm:$0xff]
    %v39 = vld [vmem:[#allocation2 + $0x310] sm:$0xff]
    %v40 = vld [vmem:[#allocation2 + $0x318] sm:$0xff]
    %v41 = vld [vmem:[#allocation2 + $0x320] sm:$0xff]
    %v42 = vld [vmem:[#allocation2 + $0x328] sm:$0xff]
    %v43 = vld [vmem:[#allocation2 + $0x330] sm:$0xff]
    %v44 = vld [vmem:[#allocation2 + $0x338] sm:$0xff]
    %v45 = vld [vmem:[#allocation2 + $0x340] sm:$0xff]
    %v46 = vld [vmem:[#allocation2 + $0x348] sm:$0xff]
    %v47 = vld [vmem:[#allocation2 + $0x350] sm:$0xff]
    %v48 = vld [vmem:[#allocation2 + $0x358] sm:$0xff]
    %v49 = vld [vmem:[#allocation2 + $0x360] sm:$0xff]
    %v50 = vld [vmem:[#allocation2 + $0x368] sm:$0xff]
    %v51 = vld [vmem:[#allocation2 + $0x370] sm:$0xff]
    %v52 = vld [vmem:[#allocation2 + $0x378] sm:$0xff]
    %v53 = vld [vmem:[#allocation2 + $0x380] sm:$0xff]
    %v54 = vld [vmem:[#allocation2 + $0x388] sm:$0xff]
    %v55 = vld [vmem:[#allocation2 + $0x390] sm:$0xff]
    %v56 = vld [vmem:[#allocation2 + $0x398] sm:$0xff]
    %v57 = vld [vmem:[#allocation2 + $0x3a0] sm:$0xff]
    %v58 = vld [vmem:[#allocation2 + $0x3a8] sm:$0xff]
    %v59 = vld [vmem:[#allocation2 + $0x3b0] sm:$0xff]
    %v60 = vld [vmem:[#allocation2 + $0x3b8] sm:$0xff]
    %v61 = vld [vmem:[#allocation2 + $0x3c0] sm:$0xff]
    %v62 = vld [vmem:[#allocation2 + $0x3c8] sm:$0xff]
    %v63 = vld [vmem:[#allocation2 + $0x3d0] sm:$0xff]
    %v64 = vld [vmem:[#allocation2 + $0x3d8] sm:$0xff]
    %v65 = vld [vmem:[#allocation2 + $0x3e0] sm:$0xff]
    %v66 = vld [vmem:[#allocation2 + $0x3e8] sm:$0xff]
    %v67 = vld [vmem:[#allocation2 + $0x3f0] sm:$0xff]
    %v68 = vld [vmem:[#allocation2 + $0x3f8] sm:$0xff]
    %v69 = vld [vmem:[#allocation2 + $0x400] sm:$0xff]
    %v70 = vld [vmem:[#allocation2 + $0x408] sm:$0xff]
    %v71 = vld [vmem:[#allocation2 + $0x410] sm:$0xff]
    %v72 = vld [vmem:[#allocation2 + $0x418] sm:$0xff]
    %v73 = vld [vmem:[#allocation2 + $0x420] sm:$0xff]
    %v74 = vld [vmem:[#allocation2 + $0x428] sm:$0xff]
    %v75 = vld [vmem:[#allocation2 + $0x430] sm:$0xff]
    %v76 = vld [vmem:[#allocation2 + $0x438] sm:$0xff]
    %v77 = vld [vmem:[#allocation2 + $0x440] sm:$0xff]
    %v78 = vld [vmem:[#allocation2 + $0x448] sm:$0xff]
    %v79 = vld [vmem:[#allocation2 + $0x450] sm:$0xff]
    %v80 = vld [vmem:[#allocation2 + $0x488] sm:$0xff]
    %v81 = vld [vmem:[#allocation2 + $0x490] sm:$0xff]
    %v82 = vld [vmem:[%s0 + $0x30] sm:$0xff]
    %v83 = vld [vmem:[%s0 + $0x38] sm:$0xff]
    %v84 = vld [vmem:[%s0 + $0x40] sm:$0xff]
    %v85 = vld [vmem:[%s0 + $0x48] sm:$0xff]
    %v86 = vld [vmem:[%s0] sm:$0xff]
    %v87 = vld [vmem:[%s0 + $0x8] sm:$0xff]
    %v88 = vld [vmem:[%s0 + $0x10] sm:$0xff]
    %v89 = vld [vmem:[%s0 + $0x18] sm:$0xff]
    %v90 = vld [vmem:[%s0 + $0x20] sm:$0xff]
    %v91 = vld [vmem:[%s0 + $0x28] sm:$0xff]
    %v92 = vld [vmem:[#allocation2] sm:$0xff]
    %v93 = vld [vmem:[#allocation2 + $0x8] sm:$0xff]
    %v94 = vld [vmem:[#allocation2 + $0x10] sm:$0xff]
    %v95 = vld [vmem:[#allocation2 + $0x18] sm:$0xff]
    %v96 = vpack.c.bf16 %v87, %v86
    %v97 = vpack.c.bf16 %v89, %v88
    %v98 = vpack.c.bf16 %v93, %v92
    %v99 = vpack.c.bf16 %v95, %v94
    %v100 = vld [vmem:[#allocation2 + $0x20] sm:$0x1]
    %v101 = vperm.slane %v100, 0
    %vm102 = vcmask 261120
    %v104 = vsel %vm102, %v96, 0
    %v107 = vsel %vm102, %v97, 0
    %109 = vmatpush.bf16.msra.mxu0 0
    %110 = vmatpush.bf16.msra.mxu0 0
    %111 = vmatpush.bf16.msra.mxu0 0
    %112 = vmatpush.bf16.msra.mxu0 0
    %113 = vmatpush.bf16.msra.mxu0 0
    %114 = vmatpush.bf16.msra.mxu0 0
    %115 = vmatpush.bf16.msra.mxu0 %v99
    %116 = vmatpush.bf16.msra.mxu0 %v98
    %117 = vmatmul.bf16.gmra.mxu0 %v104
    %v118 = vpop.f32.mrf.mxu0
    %v119 = vadd.f32 %v101, %v118
    %v120 = vpop.f32.mrf.mxu0
    %v121 = vadd.f32 %v101, %v120
    %122 = vmatmul.bf16.gmra.mxu0 %v107
    %v123 = vpop.f32.mrf.mxu0
    %v124 = vadd.f32 %v101, %v123
    %v125 = vpop.f32.mrf.mxu0
    %v126 = vadd.f32 %v101, %v125
    %127 = vdwg.mxu0
    %v128 = vld [vmem:[#allocation2 + $0x28] sm:$0xff]
    %v129 = vld [vmem:[#allocation2 + $0x30] sm:$0xff]
    %v130 = vld [vmem:[#allocation2 + $0x38] sm:$0xff]
    %v131 = vld [vmem:[#allocation2 + $0x40] sm:$0xff]
    %v132 = vpack.c.bf16 %v91, %v90
    %v133 = vpack.c.bf16 %v129, %v128
    %v134 = vpack.c.bf16 %v131, %v130
    %v135 = vld [vmem:[#allocation2 + $0x48] sm:$0x1]
    %v136 = vperm.slane %v135, 0
    %v138 = vsel %vm102, %v132, 0
    %140 = vmatpush.bf16.msra.mxu0 0
    %141 = vmatpush.bf16.msra.mxu0 0
    %142 = vmatpush.bf16.msra.mxu0 0
    %143 = vmatpush.bf16.msra.mxu0 0
    %144 = vmatpush.bf16.msra.mxu0 0
    %145 = vmatpush.bf16.msra.mxu0 0
    %146 = vmatpush.bf16.msra.mxu0 %v134
    %147 = vmatpush.bf16.msra.mxu0 %v133
    %148 = vmatmul.bf16.gmra.mxu0 %v138
    %v149 = vpop.f32.mrf.mxu0
    %v150 = vadd.f32 %v136, %v149
    %v151 = vpop.f32.mrf.mxu0
    %v152 = vadd.f32 %v136, %v151
    %153 = vdwg.mxu0
    %v154 = vld [vmem:[#allocation2 + $0x50] sm:$0xff]
    %v155 = vld [vmem:[#allocation2 + $0x58] sm:$0xff]
    %v156 = vld [vmem:[#allocation2 + $0x60] sm:$0xff]
    %v157 = vld [vmem:[#allocation2 + $0x68] sm:$0xff]
    %v158 = vld [vmem:[#allocation2 + $0x70] sm:$0xff]
    %v159 = vld [vmem:[#allocation2 + $0x78] sm:$0xff]
    %v160 = vld [vmem:[#allocation2 + $0x80] sm:$0xff]
    %v161 = vld [vmem:[#allocation2 + $0x88] sm:$0xff]
    %v162 = vld [vmem:[#allocation2 + $0xd0] sm:$0xff]
    %v163 = vld [vmem:[#allocation2 + $0xd8] sm:$0xff]
    %v164 = vld [vmem:[#allocation2 + $0xe0] sm:$0xff]
    %v165 = vld [vmem:[#allocation2 + $0xe8] sm:$0xff]
    %v166 = vld [vmem:[#allocation2 + $0xf0] sm:$0x1]
    %v167 = vld [vmem:[#allocation2 + $0x458] sm:$0xff]
    %v168 = vld [vmem:[#allocation2 + $0x460] sm:$0xff]
    %v169 = vld [vmem:[#allocation2 + $0x468] sm:$0xff]
    %v170 = vld [vmem:[#allocation2 + $0x470] sm:$0xff]
    %v171 = vpack.c.bf16 %v121, %v119
    %v172 = vpack.c.bf16 %v126, %v124
    %v173 = vpack.c.bf16 %v155, %v154
    %v174 = vpack.c.bf16 %v157, %v156
    %v176 = vsel %vm102, %v171, 0
    %v179 = vsel %vm102, %v172, 0
    %181 = vmatpush.bf16.msra.mxu0 0
    %182 = vmatpush.bf16.msra.mxu0 0
    %183 = vmatpush.bf16.msra.mxu0 0
    %184 = vmatpush.bf16.msra.mxu0 0
    %185 = vmatpush.bf16.msra.mxu0 0
    %186 = vmatpush.bf16.msra.mxu0 0
    %187 = vmatpush.bf16.msra.mxu0 %v174
    %188 = vmatpush.bf16.msra.mxu0 %v173
    %189 = vmatmul.bf16.gmra.mxu0 %v176
    %v190 = vpop.f32.mrf.mxu0
    %v191 = vadd.f32 0.0, %v190
    %v192 = vpop.f32.mrf.mxu0
    %v193 = vadd.f32 0.0, %v192
    %194 = vmatmul.bf16.gmra.mxu0 %v179
    %v195 = vpop.f32.mrf.mxu0
    %v196 = vadd.f32 0.0, %v195
    %v197 = vpop.f32.mrf.mxu0
    %v198 = vadd.f32 0.0, %v197
    %199 = vdwg.mxu0
    %v200 = vpack.c.bf16 %v159, %v158
    %v201 = vpack.c.bf16 %v161, %v160
    %v202 = vmul.f32 %v191, %v76
    %v203 = vmul.f32 %v193, %v77
    %v204 = vmul.f32 %v196, %v78
    %v205 = vmul.f32 %v198, %v79
    %v206 = vpack.c.bf16 %v168, %v167
    %v207 = vpack.c.bf16 %v170, %v169
    %v208 = vpack.c.bf16 %v203, %v202
    %v209 = vpack.c.bf16 %v205, %v204
    %v211 = vsel %vm102, %v206, 0
    %v214 = vsel %vm102, %v207, 0
    %216 = vmatpush.bf16.msra.mxu0 0
    %217 = vmatpush.bf16.msra.mxu0 0
    %218 = vmatpush.bf16.msra.mxu0 0
    %219 = vmatpush.bf16.msra.mxu0 0
    %220 = vmatpush.bf16.msra.mxu0 0
    %221 = vmatpush.bf16.msra.mxu0 0
    %222 = vmatpush.bf16.msra.mxu0 %v209
    %223 = vmatpush.bf16.msra.mxu0 %v208
    %224 = vmatmul.bf16.gmra.mxu0 %v211
    %v225 = vpop.f32.mrf.mxu0
    %v226 = vadd.f32 0.0, %v225
    %v227 = vpop.f32.mrf.mxu0
    %v228 = vadd.f32 0.0, %v227
    %229 = vmatmul.bf16.gmra.mxu0 %v214
    %v230 = vpop.f32.mrf.mxu0
    %v231 = vadd.f32 0.0, %v230
    %v232 = vpop.f32.mrf.mxu0
    %v233 = vadd.f32 0.0, %v232
    %234 = vdwg.mxu0
    %237 = vrot.lane.b32.xlu0 %v171, 96
    %v238 = vpop.permute.xlu0 %237
    %239 = vrot.lane.b32.xlu0 %v172, 96
    %v240 = vpop.permute.xlu0 %239
    %v242 = vsel %vm102, %v238, 0
    %v245 = vsel %vm102, %v240, 0
    %247 = vmatpush.bf16.msra.mxu0 0
    %248 = vmatpush.bf16.msra.mxu0 0
    %249 = vmatpush.bf16.msra.mxu0 0
    %250 = vmatpush.bf16.msra.mxu0 0
    %251 = vmatpush.bf16.msra.mxu0 0
    %252 = vmatpush.bf16.msra.mxu0 0
    %253 = vmatpush.bf16.msra.mxu0 %v201
    %254 = vmatpush.bf16.msra.mxu0 %v200
    %255 = vmatmul.bf16.gmra.mxu0 %v242
    %v256 = vpop.f32.mrf.mxu0
    %v257 = vadd.f32 %v226, %v256
    %v258 = vpop.f32.mrf.mxu0
    %v259 = vadd.f32 %v228, %v258
    %260 = vmatmul.bf16.gmra.mxu0 %v245
    %v261 = vpop.f32.mrf.mxu0
    %v262 = vadd.f32 %v231, %v261
    %v263 = vpop.f32.mrf.mxu0
    %v264 = vadd.f32 %v233, %v263
    %265 = vdwg.mxu0
    %v266 = vtanh.pop %v257
    %v267 = vtanh.pop %v259
    %v268 = vtanh.pop %v262
    %v269 = vtanh.pop %v264
    %v270 = vmul.f32 %v266, 1.442695
    %v271 = vpow.pop %v270
    %v272 = vmul.f32 %v267, 1.442695
    %v273 = vpow.pop %v272
    %v274 = vmul.f32 %v268, 1.442695
    %v275 = vpow.pop %v274
    %v276 = vmul.f32 %v269, 1.442695
    %v277 = vpow.pop %v276
    %v278 = vpack.c.bf16 %v273, %v271
    %v279 = vpack.c.bf16 %v277, %v275
    %v280 = vpack.c.bf16 %v29, %v28
    %v281 = vpack.c.bf16 %v31, %v30
    %v282 = vpack.c.bf16 %v33, %v32
    %v283 = vpack.c.bf16 %v35, %v34
    %v284 = vpack.c.bf16 %v37, %v36
    %v285 = vpack.c.bf16 %v39, %v38
    %v286 = vpack.c.bf16 %v41, %v40
    %v287 = vpack.c.bf16 %v43, %v42
    %288 = vmatpush.bf16.msra.mxu0 %v287
    %289 = vmatpush.bf16.msra.mxu0 %v286
    %290 = vmatpush.bf16.msra.mxu0 %v285
    %291 = vmatpush.bf16.msra.mxu0 %v284
    %292 = vmatpush.bf16.msra.mxu0 %v283
    %293 = vmatpush.bf16.msra.mxu0 %v282
    %294 = vmatpush.bf16.msra.mxu0 %v281
    %295 = vmatpush.bf16.msra.mxu0 %v280
    %296 = vmatmul.bf16.gmra.mxu0 %v278
    %v297 = vpop.f32.mrf.mxu0
    %v298 = vadd.f32 0.0, %v297
    %v299 = vpop.f32.mrf.mxu0
    %v300 = vadd.f32 0.0, %v299
    %301 = vmatmul.bf16.gmra.mxu0 %v279
    %v302 = vpop.f32.mrf.mxu0
    %v303 = vadd.f32 0.0, %v302
    %v304 = vpop.f32.mrf.mxu0
    %v305 = vadd.f32 0.0, %v304
    %306 = vdwg.mxu0
    %v307 = vrcp.pop %v298
    %v308 = vrcp.pop %v300
    %v309 = vrcp.pop %v303
    %v310 = vrcp.pop %v305
    %v311 = vmul.f32 %v271, %v307
    %v312 = vmul.f32 %v273, %v308
    %v313 = vmul.f32 %v275, %v309
    %v314 = vmul.f32 %v277, %v310
    %315 = vst [vmem:[%s2] sm:$0xff] %v311
    %316 = vst [vmem:[%s2 + $0x8] sm:$0xff] %v312
    %317 = vst [vmem:[%s2 + $0x10] sm:$0xff] %v313
    %318 = vst [vmem:[%s2 + $0x18] sm:$0xff] %v314
    %v319 = vpack.c.bf16 %v45, %v44
    %v320 = vpack.c.bf16 %v47, %v46
    %v321 = vpack.c.bf16 %v49, %v48
    %v322 = vpack.c.bf16 %v51, %v50
    %v323 = vpack.c.bf16 %v53, %v52
    %v324 = vpack.c.bf16 %v55, %v54
    %v325 = vpack.c.bf16 %v57, %v56
    %v326 = vpack.c.bf16 %v59, %v58
    %vm327 = vcmask 130048
    %v329 = vsel %vm327, %v319, 0
    %v332 = vsel %vm327, %v320, 0
    %v335 = vsel %vm327, %v321, 0
    %v338 = vsel %vm327, %v322, 0
    %v341 = vsel %vm327, %v323, 0
    %v344 = vsel %vm327, %v324, 0
    %v347 = vsel %vm327, %v325, 0
    %v350 = vsel %vm327, %v326, 0
    %352 = vmatpush.bf16.msra.mxu0 0
    %353 = vmatpush.bf16.msra.mxu0 0
    %354 = vmatpush.bf16.msra.mxu0 0
    %355 = vmatpush.bf16.msra.mxu0 0
    %356 = vmatpush.bf16.msra.mxu0 0
    %357 = vmatpush.bf16.msra.mxu0 0
    %358 = vmatpush.bf16.msra.mxu0 0
    %359 = vmatpush.bf16.msra.mxu0 %v171
    %360 = vmatmul.bf16.gmra.mxu0 %v329
    %v361 = vpop.f32.mrf.mxu0
    %v362 = vadd.f32 0.0, %v361
    %v363 = vpop.f32.mrf.mxu0
    %v364 = vadd.f32 0.0, %v363
    %365 = vmatmul.bf16.gmra.mxu0 %v332
    %v366 = vpop.f32.mrf.mxu0
    %v367 = vadd.f32 0.0, %v366
    %v368 = vpop.f32.mrf.mxu0
    %v369 = vadd.f32 0.0, %v368
    %370 = vmatmul.bf16.gmra.mxu0 %v335
    %v371 = vpop.f32.mrf.mxu0
    %v372 = vadd.f32 0.0, %v371
    %v373 = vpop.f32.mrf.mxu0
    %v374 = vadd.f32 0.0, %v373
    %375 = vmatmul.bf16.gmra.mxu0 %v338
    %v376 = vpop.f32.mrf.mxu0
    %v377 = vadd.f32 0.0, %v376
    %v378 = vpop.f32.mrf.mxu0
    %v379 = vadd.f32 0.0, %v378
    %380 = vmatmul.bf16.gmra.mxu0 %v341
    %v381 = vpop.f32.mrf.mxu0
    %v382 = vadd.f32 0.0, %v381
    %v383 = vpop.f32.mrf.mxu0
    %v384 = vadd.f32 0.0, %v383
    %385 = vmatmul.bf16.gmra.mxu0 %v344
    %v386 = vpop.f32.mrf.mxu0
    %v387 = vadd.f32 0.0, %v386
    %v388 = vpop.f32.mrf.mxu0
    %v389 = vadd.f32 0.0, %v388
    %390 = vmatmul.bf16.gmra.mxu0 %v347
    %v391 = vpop.f32.mrf.mxu0
    %v392 = vadd.f32 0.0, %v391
    %v393 = vpop.f32.mrf.mxu0
    %v394 = vadd.f32 0.0, %v393
    %395 = vmatmul.bf16.gmra.mxu0 %v350
    %v396 = vpop.f32.mrf.mxu0
    %v397 = vadd.f32 0.0, %v396
    %v398 = vpop.f32.mrf.mxu0
    %v399 = vadd.f32 0.0, %v398
    %400 = vdwg.mxu0
    %v401 = vmul.f32 %v362, %v60
    %v402 = vmul.f32 %v364, %v61
    %v403 = vmul.f32 %v367, %v62
    %v404 = vmul.f32 %v369, %v63
    %v405 = vmul.f32 %v372, %v64
    %v406 = vmul.f32 %v374, %v65
    %v407 = vmul.f32 %v377, %v66
    %v408 = vmul.f32 %v379, %v67
    %v409 = vmul.f32 %v382, %v68
    %v410 = vmul.f32 %v384, %v69
    %v411 = vmul.f32 %v387, %v70
    %v412 = vmul.f32 %v389, %v71
    %v413 = vmul.f32 %v392, %v72
    %v414 = vmul.f32 %v394, %v73
    %v415 = vmul.f32 %v397, %v74
    %v416 = vmul.f32 %v399, %v75
    %v417 = vpack.c.bf16 %v312, %v311
    %v418 = vpack.c.bf16 %v402, %v401
    %v419 = vpack.c.bf16 %v404, %v403
    %v420 = vpack.c.bf16 %v406, %v405
    %v421 = vpack.c.bf16 %v408, %v407
    %v422 = vpack.c.bf16 %v410, %v409
    %v423 = vpack.c.bf16 %v412, %v411
    %v424 = vpack.c.bf16 %v414, %v413
    %v425 = vpack.c.bf16 %v416, %v415
    %426 = vmatpush.bf16.msra.mxu0 %v425
    %427 = vmatpush.bf16.msra.mxu0 %v424
    %428 = vmatpush.bf16.msra.mxu0 %v423
    %429 = vmatpush.bf16.msra.mxu0 %v422
    %430 = vmatpush.bf16.msra.mxu0 %v421
    %431 = vmatpush.bf16.msra.mxu0 %v420
    %432 = vmatpush.bf16.msra.mxu0 %v419
    %433 = vmatpush.bf16.msra.mxu0 %v418
    %434 = vmatmul.bf16.gmra.mxu0 %v417
    %v435 = vpop.f32.mrf.mxu0
    %v436 = vadd.f32 0.0, %v435
    %v437 = vpop.f32.mrf.mxu0
    %v438 = vadd.f32 0.0, %v437
    %439 = vdwg.mxu0
    %440 = vmatpush.bf16.msra.mxu0 0
    %441 = vmatpush.bf16.msra.mxu0 0
    %442 = vmatpush.bf16.msra.mxu0 0
    %443 = vmatpush.bf16.msra.mxu0 0
    %444 = vmatpush.bf16.msra.mxu0 0
    %445 = vmatpush.bf16.msra.mxu0 0
    %446 = vmatpush.bf16.msra.mxu0 0
    %447 = vmatpush.bf16.msra.mxu0 %v172
    %448 = vmatmul.bf16.gmra.mxu0 %v329
    %v449 = vpop.f32.mrf.mxu0
    %v450 = vadd.f32 0.0, %v449
    %v451 = vpop.f32.mrf.mxu0
    %v452 = vadd.f32 0.0, %v451
    %453 = vmatmul.bf16.gmra.mxu0 %v332
    %v454 = vpop.f32.mrf.mxu0
    %v455 = vadd.f32 0.0, %v454
    %v456 = vpop.f32.mrf.mxu0
    %v457 = vadd.f32 0.0, %v456
    %458 = vmatmul.bf16.gmra.mxu0 %v335
    %v459 = vpop.f32.mrf.mxu0
    %v460 = vadd.f32 0.0, %v459
    %v461 = vpop.f32.mrf.mxu0
    %v462 = vadd.f32 0.0, %v461
    %463 = vmatmul.bf16.gmra.mxu0 %v338
    %v464 = vpop.f32.mrf.mxu0
    %v465 = vadd.f32 0.0, %v464
    %v466 = vpop.f32.mrf.mxu0
    %v467 = vadd.f32 0.0, %v466
    %468 = vmatmul.bf16.gmra.mxu0 %v341
    %v469 = vpop.f32.mrf.mxu0
    %v470 = vadd.f32 0.0, %v469
    %v471 = vpop.f32.mrf.mxu0
    %v472 = vadd.f32 0.0, %v471
    %473 = vmatmul.bf16.gmra.mxu0 %v344
    %v474 = vpop.f32.mrf.mxu0
    %v475 = vadd.f32 0.0, %v474
    %v476 = vpop.f32.mrf.mxu0
    %v477 = vadd.f32 0.0, %v476
    %478 = vmatmul.bf16.gmra.mxu0 %v347
    %v479 = vpop.f32.mrf.mxu0
    %v480 = vadd.f32 0.0, %v479
    %v481 = vpop.f32.mrf.mxu0
    %v482 = vadd.f32 0.0, %v481
    %483 = vmatmul.bf16.gmra.mxu0 %v350
    %v484 = vpop.f32.mrf.mxu0
    %v485 = vadd.f32 0.0, %v484
    %v486 = vpop.f32.mrf.mxu0
    %v487 = vadd.f32 0.0, %v486
    %488 = vdwg.mxu0
    %v489 = vmul.f32 %v450, %v60
    %v490 = vmul.f32 %v452, %v61
    %v491 = vmul.f32 %v455, %v62
    %v492 = vmul.f32 %v457, %v63
    %v493 = vmul.f32 %v460, %v64
    %v494 = vmul.f32 %v462, %v65
    %v495 = vmul.f32 %v465, %v66
    %v496 = vmul.f32 %v467, %v67
    %v497 = vmul.f32 %v470, %v68
    %v498 = vmul.f32 %v472, %v69
    %v499 = vmul.f32 %v475, %v70
    %v500 = vmul.f32 %v477, %v71
    %v501 = vmul.f32 %v480, %v72
    %v502 = vmul.f32 %v482, %v73
    %v503 = vmul.f32 %v485, %v74
    %v504 = vmul.f32 %v487, %v75
    %v505 = vpack.c.bf16 %v314, %v313
    %v506 = vpack.c.bf16 %v490, %v489
    %v507 = vpack.c.bf16 %v492, %v491
    %v508 = vpack.c.bf16 %v494, %v493
    %v509 = vpack.c.bf16 %v496, %v495
    %v510 = vpack.c.bf16 %v498, %v497
    %v511 = vpack.c.bf16 %v500, %v499
    %v512 = vpack.c.bf16 %v502, %v501
    %v513 = vpack.c.bf16 %v504, %v503
    %514 = vmatpush.bf16.msra.mxu0 %v513
    %515 = vmatpush.bf16.msra.mxu0 %v512
    %516 = vmatpush.bf16.msra.mxu0 %v511
    %517 = vmatpush.bf16.msra.mxu0 %v510
    %518 = vmatpush.bf16.msra.mxu0 %v509
    %519 = vmatpush.bf16.msra.mxu0 %v508
    %520 = vmatpush.bf16.msra.mxu0 %v507
    %521 = vmatpush.bf16.msra.mxu0 %v506
    %522 = vmatmul.bf16.gmra.mxu0 %v505
    %v523 = vpop.f32.mrf.mxu0
    %v524 = vadd.f32 0.0, %v523
    %v525 = vpop.f32.mrf.mxu0
    %v526 = vadd.f32 0.0, %v525
    %527 = vdwg.mxu0
    %v528 = vpack.c.bf16 %v438, %v436
    %v529 = vpack.c.bf16 %v526, %v524
    %v530 = vpack.c.bf16 %v163, %v162
    %v531 = vpack.c.bf16 %v165, %v164
    %v532 = vperm.slane %v166, 0
    %v534 = vsel %vm102, %v528, 0
    %v537 = vsel %vm102, %v529, 0
    %539 = vmatpush.bf16.msra.mxu0 0
    %540 = vmatpush.bf16.msra.mxu0 0
    %541 = vmatpush.bf16.msra.mxu0 0
    %542 = vmatpush.bf16.msra.mxu0 0
    %543 = vmatpush.bf16.msra.mxu0 0
    %544 = vmatpush.bf16.msra.mxu0 0
    %545 = vmatpush.bf16.msra.mxu0 %v531
    %546 = vmatpush.bf16.msra.mxu0 %v530
    %547 = vmatmul.bf16.gmra.mxu0 %v534
    %v548 = vpop.f32.mrf.mxu0
    %v549 = vadd.f32 %v532, %v548
    %v550 = vpop.f32.mrf.mxu0
    %v551 = vadd.f32 %v532, %v550
    %552 = vmatmul.bf16.gmra.mxu0 %v537
    %v553 = vpop.f32.mrf.mxu0
    %v554 = vadd.f32 %v532, %v553
    %v555 = vpop.f32.mrf.mxu0
    %v556 = vadd.f32 %v532, %v555
    %557 = vdwg.mxu0
    %v558 = vld [vmem:[#allocation2 + $0x120] sm:$0xff]
    %v559 = vld [vmem:[#allocation2 + $0x128] sm:$0xff]
    %v560 = vld [vmem:[#allocation2 + $0x130] sm:$0xff]
    %v561 = vld [vmem:[#allocation2 + $0x138] sm:$0xff]
    %v562 = vld [vmem:[#allocation2 + $0x140] sm:$0x1]
    %v563 = vld [vmem:[#allocation2 + $0x148] sm:$0xff]
    %v564 = vld [vmem:[#allocation2 + $0x150] sm:$0xff]
    %v565 = vld [vmem:[#allocation2 + $0x158] sm:$0xff]
    %v566 = vld [vmem:[#allocation2 + $0x160] sm:$0xff]
    %v567 = vld [vmem:[#allocation2 + $0x168] sm:$0x1]
    %v568 = vpack.c.bf16 %v551, %v549
    %v569 = vpack.c.bf16 %v556, %v554
    %v570 = vpack.c.bf16 %v559, %v558
    %v571 = vpack.c.bf16 %v561, %v560
    %v572 = vperm.slane %v562, 0
    %v574 = vsel %vm102, %v568, 0
    %v577 = vsel %vm102, %v569, 0
    %579 = vmatpush.bf16.msra.mxu0 0
    %580 = vmatpush.bf16.msra.mxu0 0
    %581 = vmatpush.bf16.msra.mxu0 0
    %582 = vmatpush.bf16.msra.mxu0 0
    %583 = vmatpush.bf16.msra.mxu0 0
    %584 = vmatpush.bf16.msra.mxu0 0
    %585 = vmatpush.bf16.msra.mxu0 %v571
    %586 = vmatpush.bf16.msra.mxu0 %v570
    %587 = vmatmul.bf16.gmra.mxu0 %v574
    %v588 = vpop.f32.mrf.mxu0
    %v589 = vadd.f32 %v572, %v588
    %v590 = vpop.f32.mrf.mxu0
    %v591 = vadd.f32 %v572, %v590
    %592 = vmatmul.bf16.gmra.mxu0 %v577
    %v593 = vpop.f32.mrf.mxu0
    %v594 = vadd.f32 %v572, %v593
    %v595 = vpop.f32.mrf.mxu0
    %v596 = vadd.f32 %v572, %v595
    %597 = vdwg.mxu0
    %v598 = vmax.f32 %v589, 0.0
    %v599 = vmax.f32 %v591, 0.0
    %v600 = vmax.f32 %v594, 0.0
    %v601 = vmax.f32 %v596, 0.0
    %v602 = vpack.c.bf16 %v599, %v598
    %v603 = vpack.c.bf16 %v601, %v600
    %v604 = vpack.c.bf16 %v564, %v563
    %v605 = vpack.c.bf16 %v566, %v565
    %v606 = vperm.slane %v567, 0
    %v608 = vsel %vm102, %v602, 0
    %v611 = vsel %vm102, %v603, 0
    %613 = vmatpush.bf16.msra.mxu0 0
    %614 = vmatpush.bf16.msra.mxu0 0
    %615 = vmatpush.bf16.msra.mxu0 0
    %616 = vmatpush.bf16.msra.mxu0 0
    %617 = vmatpush.bf16.msra.mxu0 0
    %618 = vmatpush.bf16.msra.mxu0 0
    %619 = vmatpush.bf16.msra.mxu0 %v605
    %620 = vmatpush.bf16.msra.mxu0 %v604
    %621 = vmatmul.bf16.gmra.mxu0 %v608
    %v622 = vpop.f32.mrf.mxu0
    %v623 = vadd.f32 %v606, %v622
    %v624 = vpop.f32.mrf.mxu0
    %v625 = vadd.f32 %v606, %v624
    %626 = vmatmul.bf16.gmra.mxu0 %v611
    %v627 = vpop.f32.mrf.mxu0
    %v628 = vadd.f32 %v606, %v627
    %v629 = vpop.f32.mrf.mxu0
    %v630 = vadd.f32 %v606, %v629
    %631 = vdwg.mxu0
    %v632 = vld [vmem:[#allocation2 + $0x90] sm:$0xff]
    %v633 = vld [vmem:[#allocation2 + $0x98] sm:$0xff]
    %v634 = vld [vmem:[#allocation2 + $0xa0] sm:$0xff]
    %v635 = vld [vmem:[#allocation2 + $0xa8] sm:$0xff]
    %v636 = vld [vmem:[#allocation2 + $0xb0] sm:$0xff]
    %v637 = vld [vmem:[#allocation2 + $0xb8] sm:$0xff]
    %v638 = vld [vmem:[#allocation2 + $0xc0] sm:$0xff]
    %v639 = vld [vmem:[#allocation2 + $0xc8] sm:$0xff]
    %v640 = vld [vmem:[#allocation2 + $0xf8] sm:$0xff]
    %v641 = vld [vmem:[#allocation2 + $0x100] sm:$0xff]
    %v642 = vld [vmem:[#allocation2 + $0x108] sm:$0xff]
    %v643 = vld [vmem:[#allocation2 + $0x110] sm:$0xff]
    %v644 = vld [vmem:[#allocation2 + $0x118] sm:$0x1]
    %v645 = vld [vmem:[#allocation2 + $0x478] sm:$0xff]
    %v646 = vld [vmem:[#allocation2 + $0x480] sm:$0xff]
    %v647 = vpack.c.bf16 %v633, %v632
    %v648 = vpack.c.bf16 %v635, %v634
    %649 = vrot.lane.b32.xlu0 %v171, 64
    %v650 = vpop.permute.xlu0 %649
    %651 = vrot.lane.b32.xlu0 %v172, 64
    %v652 = vpop.permute.xlu0 %651
    %v654 = vsel %vm102, %v650, 0
    %v657 = vsel %vm102, %v652, 0
    %659 = vmatpush.bf16.msra.mxu0 0
    %660 = vmatpush.bf16.msra.mxu0 0
    %661 = vmatpush.bf16.msra.mxu0 0
    %662 = vmatpush.bf16.msra.mxu0 0
    %663 = vmatpush.bf16.msra.mxu0 0
    %664 = vmatpush.bf16.msra.mxu0 0
    %665 = vmatpush.bf16.msra.mxu0 %v648
    %666 = vmatpush.bf16.msra.mxu0 %v647
    %667 = vmatmul.bf16.gmra.mxu0 %v654
    %v668 = vpop.f32.mrf.mxu0
    %v669 = vadd.f32 0.0, %v668
    %v670 = vpop.f32.mrf.mxu0
    %v671 = vadd.f32 0.0, %v670
    %672 = vmatmul.bf16.gmra.mxu0 %v657
    %v673 = vpop.f32.mrf.mxu0
    %v674 = vadd.f32 0.0, %v673
    %v675 = vpop.f32.mrf.mxu0
    %v676 = vadd.f32 0.0, %v675
    %677 = vdwg.mxu0
    %v678 = vpack.c.bf16 %v152, %v150
    %v679 = vpack.c.bf16 %v637, %v636
    %v680 = vpack.c.bf16 %v639, %v638
    %v681 = vmul.f32 %v669, %v76
    %v682 = vmul.f32 %v671, %v77
    %v683 = vmul.f32 %v674, %v78
    %v684 = vmul.f32 %v676, %v79
    %v685 = vpack.c.bf16 %v646, %v645
    %v686 = vpack.c.bf16 %v682, %v681
    %v687 = vpack.c.bf16 %v684, %v683
    %v689 = vsel %vm102, %v685, 0
    %691 = vmatpush.bf16.msra.mxu0 0
    %692 = vmatpush.bf16.msra.mxu0 0
    %693 = vmatpush.bf16.msra.mxu0 0
    %694 = vmatpush.bf16.msra.mxu0 0
    %695 = vmatpush.bf16.msra.mxu0 0
    %696 = vmatpush.bf16.msra.mxu0 0
    %697 = vmatpush.bf16.msra.mxu0 %v687
    %698 = vmatpush.bf16.msra.mxu0 %v686
    %699 = vmatmul.bf16.gmra.mxu0 %v689
    %v700 = vpop.f32.mrf.mxu0
    %v701 = vadd.f32 0.0, %v700
    %v702 = vpop.f32.mrf.mxu0
    %v703 = vadd.f32 0.0, %v702
    %704 = vdwg.mxu0
    %v706 = vsel %vm102, %v678, 0
    %708 = vmatpush.bf16.msra.mxu0 0
    %709 = vmatpush.bf16.msra.mxu0 0
    %710 = vmatpush.bf16.msra.mxu0 0
    %711 = vmatpush.bf16.msra.mxu0 0
    %712 = vmatpush.bf16.msra.mxu0 0
    %713 = vmatpush.bf16.msra.mxu0 0
    %714 = vmatpush.bf16.msra.mxu0 %v680
    %715 = vmatpush.bf16.msra.mxu0 %v679
    %716 = vmatmul.bf16.gmra.mxu0 %v706
    %v717 = vpop.f32.mrf.mxu0
    %v718 = vadd.f32 %v701, %v717
    %v719 = vpop.f32.mrf.mxu0
    %v720 = vadd.f32 %v703, %v719
    %721 = vdwg.mxu0
    %v722 = vtanh.pop %v718
    %v723 = vtanh.pop %v720
    %v724 = vmul.f32 %v722, 1.442695
    %v725 = vpow.pop %v724
    %v726 = vmul.f32 %v723, 1.442695
    %v727 = vpow.pop %v726
    %v728 = vpack.c.bf16 %v727, %v725
    %729 = vmatpush.bf16.msra.mxu0 %v287
    %730 = vmatpush.bf16.msra.mxu0 %v286
    %731 = vmatpush.bf16.msra.mxu0 %v285
    %732 = vmatpush.bf16.msra.mxu0 %v284
    %733 = vmatpush.bf16.msra.mxu0 %v283
    %734 = vmatpush.bf16.msra.mxu0 %v282
    %735 = vmatpush.bf16.msra.mxu0 %v281
    %736 = vmatpush.bf16.msra.mxu0 %v280
    %737 = vmatmul.bf16.gmra.mxu0 %v728
    %v738 = vpop.f32.mrf.mxu0
    %v739 = vadd.f32 0.0, %v738
    %v740 = vpop.f32.mrf.mxu0
    %v741 = vadd.f32 0.0, %v740
    %742 = vdwg.mxu0
    %v743 = vrcp.pop %v739
    %v744 = vrcp.pop %v741
    %v745 = vmul.f32 %v725, %v743
    %v746 = vmul.f32 %v727, %v744
    %747 = vst [vmem:[%s2 + $0x20] sm:$0xff] %v745
    %748 = vst [vmem:[%s2 + $0x28] sm:$0xff] %v746
    %750 = vmatpush.bf16.msra.mxu0 0
    %751 = vmatpush.bf16.msra.mxu0 0
    %752 = vmatpush.bf16.msra.mxu0 0
    %753 = vmatpush.bf16.msra.mxu0 0
    %754 = vmatpush.bf16.msra.mxu0 0
    %755 = vmatpush.bf16.msra.mxu0 0
    %756 = vmatpush.bf16.msra.mxu0 0
    %757 = vmatpush.bf16.msra.mxu0 %v650
    %758 = vmatmul.bf16.gmra.mxu0 %v329
    %v759 = vpop.f32.mrf.mxu0
    %v760 = vadd.f32 0.0, %v759
    %v761 = vpop.f32.mrf.mxu0
    %v762 = vadd.f32 0.0, %v761
    %763 = vmatmul.bf16.gmra.mxu0 %v332
    %v764 = vpop.f32.mrf.mxu0
    %v765 = vadd.f32 0.0, %v764
    %v766 = vpop.f32.mrf.mxu0
    %v767 = vadd.f32 0.0, %v766
    %768 = vmatmul.bf16.gmra.mxu0 %v335
    %v769 = vpop.f32.mrf.mxu0
    %v770 = vadd.f32 0.0, %v769
    %v771 = vpop.f32.mrf.mxu0
    %v772 = vadd.f32 0.0, %v771
    %773 = vmatmul.bf16.gmra.mxu0 %v338
    %v774 = vpop.f32.mrf.mxu0
    %v775 = vadd.f32 0.0, %v774
    %v776 = vpop.f32.mrf.mxu0
    %v777 = vadd.f32 0.0, %v776
    %778 = vmatmul.bf16.gmra.mxu0 %v341
    %v779 = vpop.f32.mrf.mxu0
    %v780 = vadd.f32 0.0, %v779
    %v781 = vpop.f32.mrf.mxu0
    %v782 = vadd.f32 0.0, %v781
    %783 = vmatmul.bf16.gmra.mxu0 %v344
    %v784 = vpop.f32.mrf.mxu0
    %v785 = vadd.f32 0.0, %v784
    %v786 = vpop.f32.mrf.mxu0
    %v787 = vadd.f32 0.0, %v786
    %788 = vmatmul.bf16.gmra.mxu0 %v347
    %v789 = vpop.f32.mrf.mxu0
    %v790 = vadd.f32 0.0, %v789
    %v791 = vpop.f32.mrf.mxu0
    %v792 = vadd.f32 0.0, %v791
    %793 = vmatmul.bf16.gmra.mxu0 %v350
    %v794 = vpop.f32.mrf.mxu0
    %v795 = vadd.f32 0.0, %v794
    %v796 = vpop.f32.mrf.mxu0
    %v797 = vadd.f32 0.0, %v796
    %798 = vdwg.mxu0
    %v799 = vmul.f32 %v760, %v60
    %v800 = vmul.f32 %v762, %v61
    %v801 = vmul.f32 %v765, %v62
    %v802 = vmul.f32 %v767, %v63
    %v803 = vmul.f32 %v770, %v64
    %v804 = vmul.f32 %v772, %v65
    %v805 = vmul.f32 %v775, %v66
    %v806 = vmul.f32 %v777, %v67
    %v807 = vmul.f32 %v780, %v68
    %v808 = vmul.f32 %v782, %v69
    %v809 = vmul.f32 %v785, %v70
    %v810 = vmul.f32 %v787, %v71
    %v811 = vmul.f32 %v790, %v72
    %v812 = vmul.f32 %v792, %v73
    %v813 = vmul.f32 %v795, %v74
    %v814 = vmul.f32 %v797, %v75
    %v815 = vpack.c.bf16 %v745, %v745
    %v816 = vpack.c.bf16 %v800, %v799
    %v817 = vpack.c.bf16 %v802, %v801
    %v818 = vpack.c.bf16 %v804, %v803
    %v819 = vpack.c.bf16 %v806, %v805
    %v820 = vpack.c.bf16 %v808, %v807
    %v821 = vpack.c.bf16 %v810, %v809
    %v822 = vpack.c.bf16 %v812, %v811
    %v823 = vpack.c.bf16 %v814, %v813
    %824 = vmatpush.bf16.msra.mxu0 %v823
    %825 = vmatpush.bf16.msra.mxu0 %v822
    %826 = vmatpush.bf16.msra.mxu0 %v821
    %827 = vmatpush.bf16.msra.mxu0 %v820
    %828 = vmatpush.bf16.msra.mxu0 %v819
    %829 = vmatpush.bf16.msra.mxu0 %v818
    %830 = vmatpush.bf16.msra.mxu0 %v817
    %831 = vmatpush.bf16.msra.mxu0 %v816
    %832 = vmatmul.bf16.gmra.mxu0 %v815
    %v833 = vpop.f32.mrf.mxu0
    %v834 = vadd.f32 0.0, %v833
    %v835 = vpop.f32.mrf.mxu0
    %836 = vdwg.mxu0
    %838 = vmatpush.bf16.msra.mxu0 0
    %839 = vmatpush.bf16.msra.mxu0 0
    %840 = vmatpush.bf16.msra.mxu0 0
    %841 = vmatpush.bf16.msra.mxu0 0
    %842 = vmatpush.bf16.msra.mxu0 0
    %843 = vmatpush.bf16.msra.mxu0 0
    %844 = vmatpush.bf16.msra.mxu0 0
    %845 = vmatpush.bf16.msra.mxu0 %v652
    %846 = vmatmul.bf16.gmra.mxu0 %v329
    %v847 = vpop.f32.mrf.mxu0
    %v848 = vadd.f32 0.0, %v847
    %v849 = vpop.f32.mrf.mxu0
    %v850 = vadd.f32 0.0, %v849
    %851 = vmatmul.bf16.gmra.mxu0 %v332
    %v852 = vpop.f32.mrf.mxu0
    %v853 = vadd.f32 0.0, %v852
    %v854 = vpop.f32.mrf.mxu0
    %v855 = vadd.f32 0.0, %v854
    %856 = vmatmul.bf16.gmra.mxu0 %v335
    %v857 = vpop.f32.mrf.mxu0
    %v858 = vadd.f32 0.0, %v857
    %v859 = vpop.f32.mrf.mxu0
    %v860 = vadd.f32 0.0, %v859
    %861 = vmatmul.bf16.gmra.mxu0 %v338
    %v862 = vpop.f32.mrf.mxu0
    %v863 = vadd.f32 0.0, %v862
    %v864 = vpop.f32.mrf.mxu0
    %v865 = vadd.f32 0.0, %v864
    %866 = vmatmul.bf16.gmra.mxu0 %v341
    %v867 = vpop.f32.mrf.mxu0
    %v868 = vadd.f32 0.0, %v867
    %v869 = vpop.f32.mrf.mxu0
    %v870 = vadd.f32 0.0, %v869
    %871 = vmatmul.bf16.gmra.mxu0 %v344
    %v872 = vpop.f32.mrf.mxu0
    %v873 = vadd.f32 0.0, %v872
    %v874 = vpop.f32.mrf.mxu0
    %v875 = vadd.f32 0.0, %v874
    %876 = vmatmul.bf16.gmra.mxu0 %v347
    %v877 = vpop.f32.mrf.mxu0
    %v878 = vadd.f32 0.0, %v877
    %v879 = vpop.f32.mrf.mxu0
    %v880 = vadd.f32 0.0, %v879
    %881 = vmatmul.bf16.gmra.mxu0 %v350
    %v882 = vpop.f32.mrf.mxu0
    %v883 = vadd.f32 0.0, %v882
    %v884 = vpop.f32.mrf.mxu0
    %v885 = vadd.f32 0.0, %v884
    %886 = vdwg.mxu0
    %v887 = vmul.f32 %v848, %v60
    %v888 = vmul.f32 %v850, %v61
    %v889 = vmul.f32 %v853, %v62
    %v890 = vmul.f32 %v855, %v63
    %v891 = vmul.f32 %v858, %v64
    %v892 = vmul.f32 %v860, %v65
    %v893 = vmul.f32 %v863, %v66
    %v894 = vmul.f32 %v865, %v67
    %v895 = vmul.f32 %v868, %v68
    %v896 = vmul.f32 %v870, %v69
    %v897 = vmul.f32 %v873, %v70
    %v898 = vmul.f32 %v875, %v71
    %v899 = vmul.f32 %v878, %v72
    %v900 = vmul.f32 %v880, %v73
    %v901 = vmul.f32 %v883, %v74
    %v902 = vmul.f32 %v885, %v75
    %v903 = vpack.c.bf16 %v746, %v746
    %v904 = vpack.c.bf16 %v888, %v887
    %v905 = vpack.c.bf16 %v890, %v889
    %v906 = vpack.c.bf16 %v892, %v891
    %v907 = vpack.c.bf16 %v894, %v893
    %v908 = vpack.c.bf16 %v896, %v895
    %v909 = vpack.c.bf16 %v898, %v897
    %v910 = vpack.c.bf16 %v900, %v899
    %v911 = vpack.c.bf16 %v902, %v901
    %912 = vmatpush.bf16.msra.mxu0 %v911
    %913 = vmatpush.bf16.msra.mxu0 %v910
    %914 = vmatpush.bf16.msra.mxu0 %v909
    %915 = vmatpush.bf16.msra.mxu0 %v908
    %916 = vmatpush.bf16.msra.mxu0 %v907
    %917 = vmatpush.bf16.msra.mxu0 %v906
    %918 = vmatpush.bf16.msra.mxu0 %v905
    %919 = vmatpush.bf16.msra.mxu0 %v904
    %920 = vmatmul.bf16.gmra.mxu0 %v903
    %v921 = vpop.f32.mrf.mxu0
    %v922 = vadd.f32 0.0, %v921
    %v923 = vpop.f32.mrf.mxu0
    %924 = vdwg.mxu0
    %v925 = vpack.c.bf16 %v922, %v834
    %v926 = vpack.c.bf16 %v641, %v640
    %v927 = vpack.c.bf16 %v643, %v642
    %v928 = vperm.slane %v644, 0
    %v930 = vsel %vm102, %v925, 0
    %932 = vmatpush.bf16.msra.mxu0 0
    %933 = vmatpush.bf16.msra.mxu0 0
    %934 = vmatpush.bf16.msra.mxu0 0
    %935 = vmatpush.bf16.msra.mxu0 0
    %936 = vmatpush.bf16.msra.mxu0 0
    %937 = vmatpush.bf16.msra.mxu0 0
    %938 = vmatpush.bf16.msra.mxu0 %v927
    %939 = vmatpush.bf16.msra.mxu0 %v926
    %940 = vmatmul.bf16.gmra.mxu0 %v930
    %v941 = vpop.f32.mrf.mxu0
    %v942 = vadd.f32 %v928, %v941
    %v943 = vpop.f32.mrf.mxu0
    %v944 = vadd.f32 %v928, %v943
    %945 = vdwg.mxu0
    %v946 = vld [vmem:[#allocation2 + $0x170] sm:$0xff]
    %v947 = vld [vmem:[#allocation2 + $0x178] sm:$0xff]
    %v948 = vld [vmem:[#allocation2 + $0x180] sm:$0xff]
    %v949 = vld [vmem:[#allocation2 + $0x188] sm:$0xff]
    %v950 = vld [vmem:[#allocation2 + $0x190] sm:$0x1]
    %v951 = vld [vmem:[#allocation2 + $0x198] sm:$0xff]
    %v952 = vld [vmem:[#allocation2 + $0x1a0] sm:$0xff]
    %v953 = vld [vmem:[#allocation2 + $0x1a8] sm:$0xff]
    %v954 = vld [vmem:[#allocation2 + $0x1b0] sm:$0xff]
    %v955 = vld [vmem:[#allocation2 + $0x1b8] sm:$0x1]
    %v956 = vpack.c.bf16 %v944, %v942
    %v957 = vpack.c.bf16 %v947, %v946
    %v958 = vpack.c.bf16 %v949, %v948
    %v959 = vperm.slane %v950, 0
    %v961 = vsel %vm102, %v956, 0
    %963 = vmatpush.bf16.msra.mxu0 0
    %964 = vmatpush.bf16.msra.mxu0 0
    %965 = vmatpush.bf16.msra.mxu0 0
    %966 = vmatpush.bf16.msra.mxu0 0
    %967 = vmatpush.bf16.msra.mxu0 0
    %968 = vmatpush.bf16.msra.mxu0 0
    %969 = vmatpush.bf16.msra.mxu0 %v958
    %970 = vmatpush.bf16.msra.mxu0 %v957
    %971 = vmatmul.bf16.gmra.mxu0 %v961
    %v972 = vpop.f32.mrf.mxu0
    %v973 = vadd.f32 %v959, %v972
    %v974 = vpop.f32.mrf.mxu0
    %v975 = vadd.f32 %v959, %v974
    %976 = vdwg.mxu0
    %v977 = vmax.f32 %v973, 0.0
    %v978 = vmax.f32 %v975, 0.0
    %v979 = vpack.c.bf16 %v978, %v977
    %v980 = vpack.c.bf16 %v952, %v951
    %v981 = vpack.c.bf16 %v954, %v953
    %v982 = vperm.slane %v955, 0
    %v984 = vsel %vm102, %v979, 0
    %986 = vmatpush.bf16.msra.mxu0 0
    %987 = vmatpush.bf16.msra.mxu0 0
    %988 = vmatpush.bf16.msra.mxu0 0
    %989 = vmatpush.bf16.msra.mxu0 0
    %990 = vmatpush.bf16.msra.mxu0 0
    %991 = vmatpush.bf16.msra.mxu0 0
    %992 = vmatpush.bf16.msra.mxu0 %v981
    %993 = vmatpush.bf16.msra.mxu0 %v980
    %994 = vmatmul.bf16.gmra.mxu0 %v984
    %v995 = vpop.f32.mrf.mxu0
    %v996 = vadd.f32 %v982, %v995
    %v997 = vpop.f32.mrf.mxu0
    %v998 = vadd.f32 %v982, %v997
    %999 = vdwg.mxu0
    %v1000 = vld [vmem:[#allocation2 + $0x1c0] sm:$0xff]
    %v1001 = vld [vmem:[#allocation2 + $0x1c8] sm:$0xff]
    %v1002 = vld [vmem:[#allocation2 + $0x1d0] sm:$0xff]
    %v1003 = vld [vmem:[#allocation2 + $0x1d8] sm:$0xff]
    %v1004 = vld [vmem:[#allocation2 + $0x1e0] sm:$0xff]
    %v1005 = vld [vmem:[#allocation2 + $0x1e8] sm:$0xff]
    %v1006 = vld [vmem:[#allocation2 + $0x1f0] sm:$0xff]
    %v1007 = vld [vmem:[#allocation2 + $0x1f8] sm:$0xff]
    %v1008 = vld [vmem:[#allocation2 + $0x200] sm:$0x1]
    %v1009 = vpack.c.bf16 %v625, %v623
    %v1010 = vpack.c.bf16 %v630, %v628
    %v1011 = vpack.c.bf16 %v1001, %v1000
    %v1012 = vpack.c.bf16 %v1003, %v1002
    %v1014 = vsel %vm102, %v1009, 0
    %v1017 = vsel %vm102, %v1010, 0
    %1019 = vmatpush.bf16.msra.mxu0 0
    %1020 = vmatpush.bf16.msra.mxu0 0
    %1021 = vmatpush.bf16.msra.mxu0 0
    %1022 = vmatpush.bf16.msra.mxu0 0
    %1023 = vmatpush.bf16.msra.mxu0 0
    %1024 = vmatpush.bf16.msra.mxu0 0
    %1025 = vmatpush.bf16.msra.mxu0 %v1012
    %1026 = vmatpush.bf16.msra.mxu0 %v1011
    %1027 = vmatmul.bf16.gmra.mxu0 %v1014
    %v1028 = vpop.f32.mrf.mxu0
    %v1029 = vadd.f32 0.0, %v1028
    %v1030 = vpop.f32.mrf.mxu0
    %v1031 = vadd.f32 0.0, %v1030
    %1032 = vmatmul.bf16.gmra.mxu0 %v1017
    %v1033 = vpop.f32.mrf.mxu0
    %v1034 = vadd.f32 0.0, %v1033
    %v1035 = vpop.f32.mrf.mxu0
    %v1036 = vadd.f32 0.0, %v1035
    %1037 = vdwg.mxu0
    %v1038 = vpack.c.bf16 %v1031, %v1029
    %v1039 = vpack.c.bf16 %v1036, %v1034
    %v1040 = vpack.c.bf16 %v1005, %v1004
    %v1041 = vpack.c.bf16 %v1007, %v1006
    %v1043 = vsel %vm102, %v1038, 0
    %v1046 = vsel %vm102, %v1039, 0
    %1048 = vmatpush.bf16.msra.mxu0 0
    %1049 = vmatpush.bf16.msra.mxu0 0
    %1050 = vmatpush.bf16.msra.mxu0 0
    %1051 = vmatpush.bf16.msra.mxu0 0
    %1052 = vmatpush.bf16.msra.mxu0 0
    %1053 = vmatpush.bf16.msra.mxu0 0
    %1054 = vmatpush.bf16.msra.mxu0 %v1041
    %1055 = vmatpush.bf16.msra.mxu0 %v1040
    %1056 = vmatmul.bf16.gmra.mxu0 %v1043
    %v1057 = vpop.f32.mrf.mxu0
    %v1058 = vadd.f32 0.0, %v1057
    %v1059 = vpop.f32.mrf.mxu0
    %v1060 = vadd.f32 0.0, %v1059
    %1061 = vmatmul.bf16.gmra.mxu0 %v1046
    %v1062 = vpop.f32.mrf.mxu0
    %v1063 = vadd.f32 0.0, %v1062
    %v1064 = vpop.f32.mrf.mxu0
    %v1065 = vadd.f32 0.0, %v1064
    %1066 = vdwg.mxu0
    %1068 = vset.pattern.permute.xlu0 0
    %1069 = vperm.xlu0 %1068, %v1058
    %v1070 = vpop.permute.xlu0 %1069
    %1073 = vset.pattern.permute.xlu0 0
    %1074 = vperm.xlu0 %1073, %v1060
    %v1075 = vpop.permute.xlu0 %1074
    %v1077 = vmul.f32 %v1070, %v80
    %v1078 = vmul.f32 %v1075, %v81
    %v1079 = vsel %vm327, %v1077, 0.0
    %v1080 = vsel %vm327, %v1078, 0.0
    %v1081 = vadd.f32 %v1079, %v1080
    %v1082 = vrot.slane %v1081, 4
    %v1083 = vadd.f32 %v1081, %v1082
    %v1084 = vrot.slane %v1083, 2
    %v1085 = vadd.f32 %v1083, %v1084
    %v1086 = vrot.slane %v1085, 1
    %v1087 = vadd.f32 %v1085, %v1086
    %1088 = vset.pattern.permute.xlu0 1
    %1089 = vperm.xlu0 %1088, %v1058
    %v1090 = vpop.permute.xlu0 %1089
    %1092 = vset.pattern.permute.xlu0 1
    %1093 = vperm.xlu0 %1092, %v1060
    %v1094 = vpop.permute.xlu0 %1093
    %v1096 = vadd.f32 %v1090, %v1087
    %v1097 = vadd.f32 %v1094, %v1087
    %vm1098 = vcmp.gt.f32.partialorder %v1096, 0.0
    %vm1099 = vcmp.gt.f32.partialorder %v1097, 0.0
    %v1100 = vmul.f32 %v1096, 0.2
    %v1101 = vmul.f32 %v1097, 0.2
    %v1102 = vsel %vm1098, %v1096, %v1100
    %v1103 = vsel %vm1099, %v1097, %v1101
    %v1104 = vadd.f32 %v1102, %v82
    %v1105 = vadd.f32 %v1103, %v83
    %v1106 = vsel %vm327, %v1104, -inf
    %1107 = vmax.xlane.f32.xlu0 %v1106
    %v1108 = vpop.xlane.xlu0 %1107
    %v1109 = vsel %vm327, %v1105, -inf
    %1110 = vmax.xlane.f32.xlu0 %v1109
    %v1111 = vpop.xlane.xlu0 %1110
    %v1112 = vsub.f32 %v1104, %v1108
    %v1113 = vsub.f32 %v1105, %v1111
    %v1114 = vmul.f32 %v1112, 1.442695
    %v1115 = vpow.pop %v1114
    %v1116 = vmul.f32 %v1113, 1.442695
    %v1117 = vpow.pop %v1116
    %v1118 = vsel %vm327, %v1115, 0.0
    %1119 = vadd.xlane.f32.xlu0 %v1118
    %v1120 = vpop.xlane.xlu0 %1119
    %v1121 = vsel %vm327, %v1117, 0.0
    %1122 = vadd.xlane.f32.xlu0 %v1121
    %v1123 = vpop.xlane.xlu0 %1122
    %v1124 = vmax.f32 %v1120, 1e-30
    %v1125 = vmax.f32 %v1123, 1e-30
    %v1126 = vrcp.pop %v1124
    %v1127 = vrcp.pop %v1125
    %v1128 = vmul.f32 %v1115, %v1126
    %v1129 = vmul.f32 %v1117, %v1127
    %v1130 = vpack.c.bf16 %v1129, %v1128
    %v1131 = vperm.slane %v1008, 0
    %v1133 = vsel %vm327, %v1130, 0
    %1135 = vmatpush.bf16.msra.mxu0 0
    %1136 = vmatpush.bf16.msra.mxu0 0
    %1137 = vmatpush.bf16.msra.mxu0 0
    %1138 = vmatpush.bf16.msra.mxu0 0
    %1139 = vmatpush.bf16.msra.mxu0 0
    %1140 = vmatpush.bf16.msra.mxu0 0
    %1141 = vmatpush.bf16.msra.mxu0 0
    %1142 = vmatpush.bf16.msra.mxu0 %v1038
    %1143 = vmatmul.bf16.gmra.mxu0 %v1133
    %v1144 = vpop.f32.mrf.mxu0
    %v1145 = vadd.f32 %v1131, %v1144
    %v1146 = vpop.f32.mrf.mxu0
    %v1147 = vadd.f32 %v1131, %v1146
    %1148 = vdwg.mxu0
    %v1149 = vmax.f32 %v1145, 0.0
    %v1150 = vmax.f32 %v1147, 0.0
    %1152 = vset.pattern.permute.xlu0 0
    %1153 = vperm.xlu0 %1152, %v1063
    %v1154 = vpop.permute.xlu0 %1153
    %1157 = vset.pattern.permute.xlu0 0
    %1158 = vperm.xlu0 %1157, %v1065
    %v1159 = vpop.permute.xlu0 %1158
    %v1161 = vmul.f32 %v1154, %v80
    %v1162 = vmul.f32 %v1159, %v81
    %v1163 = vsel %vm327, %v1161, 0.0
    %v1164 = vsel %vm327, %v1162, 0.0
    %v1165 = vadd.f32 %v1163, %v1164
    %v1166 = vrot.slane %v1165, 4
    %v1167 = vadd.f32 %v1165, %v1166
    %v1168 = vrot.slane %v1167, 2
    %v1169 = vadd.f32 %v1167, %v1168
    %v1170 = vrot.slane %v1169, 1
    %v1171 = vadd.f32 %v1169, %v1170
    %1172 = vset.pattern.permute.xlu0 1
    %1173 = vperm.xlu0 %1172, %v1063
    %v1174 = vpop.permute.xlu0 %1173
    %1176 = vset.pattern.permute.xlu0 1
    %1177 = vperm.xlu0 %1176, %v1065
    %v1178 = vpop.permute.xlu0 %1177
    %v1180 = vadd.f32 %v1174, %v1171
    %v1181 = vadd.f32 %v1178, %v1171
    %vm1182 = vcmp.gt.f32.partialorder %v1180, 0.0
    %vm1183 = vcmp.gt.f32.partialorder %v1181, 0.0
    %v1184 = vmul.f32 %v1180, 0.2
    %v1185 = vmul.f32 %v1181, 0.2
    %v1186 = vsel %vm1182, %v1180, %v1184
    %v1187 = vsel %vm1183, %v1181, %v1185
    %v1188 = vadd.f32 %v1186, %v84
    %v1189 = vadd.f32 %v1187, %v85
    %v1190 = vsel %vm327, %v1188, -inf
    %1191 = vmax.xlane.f32.xlu0 %v1190
    %v1192 = vpop.xlane.xlu0 %1191
    %v1193 = vsel %vm327, %v1189, -inf
    %1194 = vmax.xlane.f32.xlu0 %v1193
    %v1195 = vpop.xlane.xlu0 %1194
    %v1196 = vsub.f32 %v1188, %v1192
    %v1197 = vsub.f32 %v1189, %v1195
    %v1198 = vmul.f32 %v1196, 1.442695
    %v1199 = vpow.pop %v1198
    %v1200 = vmul.f32 %v1197, 1.442695
    %v1201 = vpow.pop %v1200
    %v1202 = vsel %vm327, %v1199, 0.0
    %1203 = vadd.xlane.f32.xlu0 %v1202
    %v1204 = vpop.xlane.xlu0 %1203
    %v1205 = vsel %vm327, %v1201, 0.0
    %1206 = vadd.xlane.f32.xlu0 %v1205
    %v1207 = vpop.xlane.xlu0 %1206
    %v1208 = vmax.f32 %v1204, 1e-30
    %v1209 = vmax.f32 %v1207, 1e-30
    %v1210 = vrcp.pop %v1208
    %v1211 = vrcp.pop %v1209
    %v1212 = vmul.f32 %v1199, %v1210
    %v1213 = vmul.f32 %v1201, %v1211
    %v1214 = vpack.c.bf16 %v1213, %v1212
    %v1216 = vsel %vm327, %v1214, 0
    %1218 = vmatpush.bf16.msra.mxu0 0
    %1219 = vmatpush.bf16.msra.mxu0 0
    %1220 = vmatpush.bf16.msra.mxu0 0
    %1221 = vmatpush.bf16.msra.mxu0 0
    %1222 = vmatpush.bf16.msra.mxu0 0
    %1223 = vmatpush.bf16.msra.mxu0 0
    %1224 = vmatpush.bf16.msra.mxu0 0
    %1225 = vmatpush.bf16.msra.mxu0 %v1039
    %1226 = vmatmul.bf16.gmra.mxu0 %v1216
    %v1227 = vpop.f32.mrf.mxu0
    %v1228 = vadd.f32 %v1131, %v1227
    %v1229 = vpop.f32.mrf.mxu0
    %v1230 = vadd.f32 %v1131, %v1229
    %1231 = vdwg.mxu0
    %v1232 = vmax.f32 %v1228, 0.0
    %v1233 = vmax.f32 %v1230, 0.0
    %v1234 = vld [vmem:[#allocation2 + $0x208] sm:$0xff]
    %v1235 = vld [vmem:[#allocation2 + $0x210] sm:$0xff]
    %v1236 = vld [vmem:[#allocation2 + $0x218] sm:$0xff]
    %v1237 = vld [vmem:[#allocation2 + $0x220] sm:$0xff]
    %v1238 = vld [vmem:[#allocation2 + $0x228] sm:$0xff]
    %v1239 = vld [vmem:[#allocation2 + $0x230] sm:$0xff]
    %v1240 = vld [vmem:[#allocation2 + $0x238] sm:$0xff]
    %v1241 = vld [vmem:[#allocation2 + $0x240] sm:$0xff]
    %v1242 = vld [vmem:[#allocation2 + $0x248] sm:$0x1]
    %v1243 = vpack.c.bf16 %v1150, %v1149
    %v1244 = vpack.c.bf16 %v1233, %v1232
    %v1245 = vpack.c.bf16 %v1235, %v1234
    %v1246 = vpack.c.bf16 %v1237, %v1236
    %v1248 = vsel %vm102, %v1243, 0
    %v1251 = vsel %vm102, %v1244, 0
    %1253 = vmatpush.bf16.msra.mxu0 0
    %1254 = vmatpush.bf16.msra.mxu0 0
    %1255 = vmatpush.bf16.msra.mxu0 0
    %1256 = vmatpush.bf16.msra.mxu0 0
    %1257 = vmatpush.bf16.msra.mxu0 0
    %1258 = vmatpush.bf16.msra.mxu0 0
    %1259 = vmatpush.bf16.msra.mxu0 %v1246
    %1260 = vmatpush.bf16.msra.mxu0 %v1245
    %1261 = vmatmul.bf16.gmra.mxu0 %v1248
    %v1262 = vpop.f32.mrf.mxu0
    %v1263 = vadd.f32 0.0, %v1262
    %v1264 = vpop.f32.mrf.mxu0
    %v1265 = vadd.f32 0.0, %v1264
    %1266 = vmatmul.bf16.gmra.mxu0 %v1251
    %v1267 = vpop.f32.mrf.mxu0
    %v1268 = vadd.f32 0.0, %v1267
    %v1269 = vpop.f32.mrf.mxu0
    %v1270 = vadd.f32 0.0, %v1269
    %1271 = vdwg.mxu0
    %v1272 = vpack.c.bf16 %v1265, %v1263
    %v1273 = vpack.c.bf16 %v1270, %v1268
    %v1274 = vpack.c.bf16 %v1239, %v1238
    %v1275 = vpack.c.bf16 %v1241, %v1240
    %v1277 = vsel %vm102, %v1272, 0
    %v1280 = vsel %vm102, %v1273, 0
    %1282 = vmatpush.bf16.msra.mxu0 0
    %1283 = vmatpush.bf16.msra.mxu0 0
    %1284 = vmatpush.bf16.msra.mxu0 0
    %1285 = vmatpush.bf16.msra.mxu0 0
    %1286 = vmatpush.bf16.msra.mxu0 0
    %1287 = vmatpush.bf16.msra.mxu0 0
    %1288 = vmatpush.bf16.msra.mxu0 %v1275
    %1289 = vmatpush.bf16.msra.mxu0 %v1274
    %1290 = vmatmul.bf16.gmra.mxu0 %v1277
    %v1291 = vpop.f32.mrf.mxu0
    %v1292 = vadd.f32 0.0, %v1291
    %v1293 = vpop.f32.mrf.mxu0
    %v1294 = vadd.f32 0.0, %v1293
    %1295 = vmatmul.bf16.gmra.mxu0 %v1280
    %v1296 = vpop.f32.mrf.mxu0
    %v1297 = vadd.f32 0.0, %v1296
    %v1298 = vpop.f32.mrf.mxu0
    %v1299 = vadd.f32 0.0, %v1298
    %1300 = vdwg.mxu0
    %1302 = vset.pattern.permute.xlu0 0
    %1303 = vperm.xlu0 %1302, %v1292
    %v1304 = vpop.permute.xlu0 %1303
    %1307 = vset.pattern.permute.xlu0 0
    %1308 = vperm.xlu0 %1307, %v1294
    %v1309 = vpop.permute.xlu0 %1308
    %v1311 = vmul.f32 %v1304, %v80
    %v1312 = vmul.f32 %v1309, %v81
    %v1313 = vsel %vm327, %v1311, 0.0
    %v1314 = vsel %vm327, %v1312, 0.0
    %v1315 = vadd.f32 %v1313, %v1314
    %v1316 = vrot.slane %v1315, 4
    %v1317 = vadd.f32 %v1315, %v1316
    %v1318 = vrot.slane %v1317, 2
    %v1319 = vadd.f32 %v1317, %v1318
    %v1320 = vrot.slane %v1319, 1
    %v1321 = vadd.f32 %v1319, %v1320
    %1322 = vset.pattern.permute.xlu0 1
    %1323 = vperm.xlu0 %1322, %v1292
    %v1324 = vpop.permute.xlu0 %1323
    %1326 = vset.pattern.permute.xlu0 1
    %1327 = vperm.xlu0 %1326, %v1294
    %v1328 = vpop.permute.xlu0 %1327
    %v1330 = vadd.f32 %v1324, %v1321
    %v1331 = vadd.f32 %v1328, %v1321
    %vm1332 = vcmp.gt.f32.partialorder %v1330, 0.0
    %vm1333 = vcmp.gt.f32.partialorder %v1331, 0.0
    %v1334 = vmul.f32 %v1330, 0.2
    %v1335 = vmul.f32 %v1331, 0.2
    %v1336 = vsel %vm1332, %v1330, %v1334
    %v1337 = vsel %vm1333, %v1331, %v1335
    %v1338 = vadd.f32 %v1336, %v82
    %v1339 = vadd.f32 %v1337, %v83
    %v1340 = vsel %vm327, %v1338, -inf
    %1341 = vmax.xlane.f32.xlu0 %v1340
    %v1342 = vpop.xlane.xlu0 %1341
    %v1343 = vsel %vm327, %v1339, -inf
    %1344 = vmax.xlane.f32.xlu0 %v1343
    %v1345 = vpop.xlane.xlu0 %1344
    %v1346 = vsub.f32 %v1338, %v1342
    %v1347 = vsub.f32 %v1339, %v1345
    %v1348 = vmul.f32 %v1346, 1.442695
    %v1349 = vpow.pop %v1348
    %v1350 = vmul.f32 %v1347, 1.442695
    %v1351 = vpow.pop %v1350
    %v1352 = vsel %vm327, %v1349, 0.0
    %1353 = vadd.xlane.f32.xlu0 %v1352
    %v1354 = vpop.xlane.xlu0 %1353
    %v1355 = vsel %vm327, %v1351, 0.0
    %1356 = vadd.xlane.f32.xlu0 %v1355
    %v1357 = vpop.xlane.xlu0 %1356
    %v1358 = vmax.f32 %v1354, 1e-30
    %v1359 = vmax.f32 %v1357, 1e-30
    %v1360 = vrcp.pop %v1358
    %v1361 = vrcp.pop %v1359
    %v1362 = vmul.f32 %v1349, %v1360
    %v1363 = vmul.f32 %v1351, %v1361
    %v1364 = vpack.c.bf16 %v1363, %v1362
    %v1365 = vperm.slane %v1242, 0
    %v1367 = vsel %vm327, %v1364, 0
    %1369 = vmatpush.bf16.msra.mxu0 0
    %1370 = vmatpush.bf16.msra.mxu0 0
    %1371 = vmatpush.bf16.msra.mxu0 0
    %1372 = vmatpush.bf16.msra.mxu0 0
    %1373 = vmatpush.bf16.msra.mxu0 0
    %1374 = vmatpush.bf16.msra.mxu0 0
    %1375 = vmatpush.bf16.msra.mxu0 0
    %1376 = vmatpush.bf16.msra.mxu0 %v1272
    %1377 = vmatmul.bf16.gmra.mxu0 %v1367
    %v1378 = vpop.f32.mrf.mxu0
    %v1379 = vadd.f32 %v1365, %v1378
    %v1380 = vpop.f32.mrf.mxu0
    %v1381 = vadd.f32 %v1365, %v1380
    %1382 = vdwg.mxu0
    %v1383 = vmax.f32 %v1379, 0.0
    %v1384 = vmax.f32 %v1381, 0.0
    %1386 = vset.pattern.permute.xlu0 0
    %1387 = vperm.xlu0 %1386, %v1297
    %v1388 = vpop.permute.xlu0 %1387
    %1391 = vset.pattern.permute.xlu0 0
    %1392 = vperm.xlu0 %1391, %v1299
    %v1393 = vpop.permute.xlu0 %1392
    %v1395 = vmul.f32 %v1388, %v80
    %v1396 = vmul.f32 %v1393, %v81
    %v1397 = vsel %vm327, %v1395, 0.0
    %v1398 = vsel %vm327, %v1396, 0.0
    %v1399 = vadd.f32 %v1397, %v1398
    %v1400 = vrot.slane %v1399, 4
    %v1401 = vadd.f32 %v1399, %v1400
    %v1402 = vrot.slane %v1401, 2
    %v1403 = vadd.f32 %v1401, %v1402
    %v1404 = vrot.slane %v1403, 1
    %v1405 = vadd.f32 %v1403, %v1404
    %1406 = vset.pattern.permute.xlu0 1
    %1407 = vperm.xlu0 %1406, %v1297
    %v1408 = vpop.permute.xlu0 %1407
    %1410 = vset.pattern.permute.xlu0 1
    %1411 = vperm.xlu0 %1410, %v1299
    %v1412 = vpop.permute.xlu0 %1411
    %v1414 = vadd.f32 %v1408, %v1405
    %v1415 = vadd.f32 %v1412, %v1405
    %vm1416 = vcmp.gt.f32.partialorder %v1414, 0.0
    %vm1417 = vcmp.gt.f32.partialorder %v1415, 0.0
    %v1418 = vmul.f32 %v1414, 0.2
    %v1419 = vmul.f32 %v1415, 0.2
    %v1420 = vsel %vm1416, %v1414, %v1418
    %v1421 = vsel %vm1417, %v1415, %v1419
    %v1422 = vadd.f32 %v1420, %v84
    %v1423 = vadd.f32 %v1421, %v85
    %v1424 = vsel %vm327, %v1422, -inf
    %1425 = vmax.xlane.f32.xlu0 %v1424
    %v1426 = vpop.xlane.xlu0 %1425
    %v1427 = vsel %vm327, %v1423, -inf
    %1428 = vmax.xlane.f32.xlu0 %v1427
    %v1429 = vpop.xlane.xlu0 %1428
    %v1430 = vsub.f32 %v1422, %v1426
    %v1431 = vsub.f32 %v1423, %v1429
    %v1432 = vmul.f32 %v1430, 1.442695
    %v1433 = vpow.pop %v1432
    %v1434 = vmul.f32 %v1431, 1.442695
    %v1435 = vpow.pop %v1434
    %v1436 = vsel %vm327, %v1433, 0.0
    %1437 = vadd.xlane.f32.xlu0 %v1436
    %v1438 = vpop.xlane.xlu0 %1437
    %v1439 = vsel %vm327, %v1435, 0.0
    %1440 = vadd.xlane.f32.xlu0 %v1439
    %v1441 = vpop.xlane.xlu0 %1440
    %v1442 = vmax.f32 %v1438, 1e-30
    %v1443 = vmax.f32 %v1441, 1e-30
    %v1444 = vrcp.pop %v1442
    %v1445 = vrcp.pop %v1443
    %v1446 = vmul.f32 %v1433, %v1444
    %v1447 = vmul.f32 %v1435, %v1445
    %v1448 = vpack.c.bf16 %v1447, %v1446
    %v1450 = vsel %vm327, %v1448, 0
    %1452 = vmatpush.bf16.msra.mxu0 0
    %1453 = vmatpush.bf16.msra.mxu0 0
    %1454 = vmatpush.bf16.msra.mxu0 0
    %1455 = vmatpush.bf16.msra.mxu0 0
    %1456 = vmatpush.bf16.msra.mxu0 0
    %1457 = vmatpush.bf16.msra.mxu0 0
    %1458 = vmatpush.bf16.msra.mxu0 0
    %1459 = vmatpush.bf16.msra.mxu0 %v1273
    %1460 = vmatmul.bf16.gmra.mxu0 %v1450
    %v1461 = vpop.f32.mrf.mxu0
    %v1462 = vadd.f32 %v1365, %v1461
    %v1463 = vpop.f32.mrf.mxu0
    %v1464 = vadd.f32 %v1365, %v1463
    %1465 = vdwg.mxu0
    %v1466 = vmax.f32 %v1462, 0.0
    %v1467 = vmax.f32 %v1464, 0.0
    %v1468 = vld [vmem:[#allocation2 + $0x250] sm:$0xff]
    %v1469 = vld [vmem:[#allocation2 + $0x258] sm:$0xff]
    %v1470 = vld [vmem:[#allocation2 + $0x260] sm:$0xff]
    %v1471 = vld [vmem:[#allocation2 + $0x268] sm:$0xff]
    %v1472 = vpack.c.bf16 %v1384, %v1383
    %v1473 = vpack.c.bf16 %v1467, %v1466
    %v1474 = vpack.c.bf16 %v1469, %v1468
    %v1475 = vpack.c.bf16 %v1471, %v1470
    %v1477 = vsel %vm102, %v1472, 0
    %v1480 = vsel %vm102, %v1473, 0
    %1482 = vmatpush.bf16.msra.mxu0 0
    %1483 = vmatpush.bf16.msra.mxu0 0
    %1484 = vmatpush.bf16.msra.mxu0 0
    %1485 = vmatpush.bf16.msra.mxu0 0
    %1486 = vmatpush.bf16.msra.mxu0 0
    %1487 = vmatpush.bf16.msra.mxu0 0
    %1488 = vmatpush.bf16.msra.mxu0 %v1475
    %1489 = vmatpush.bf16.msra.mxu0 %v1474
    %1490 = vmatmul.bf16.gmra.mxu0 %v1477
    %v1491 = vpop.f32.mrf.mxu0
    %v1492 = vadd.f32 0.0, %v1491
    %v1493 = vpop.f32.mrf.mxu0
    %v1494 = vadd.f32 0.0, %v1493
    %1495 = vmatmul.bf16.gmra.mxu0 %v1480
    %v1496 = vpop.f32.mrf.mxu0
    %v1497 = vadd.f32 0.0, %v1496
    %v1498 = vpop.f32.mrf.mxu0
    %v1499 = vadd.f32 0.0, %v1498
    %1500 = vdwg.mxu0
    %v1501 = vld [vmem:[#allocation2 + $0x270] sm:$0xff]
    %v1502 = vld [vmem:[#allocation2 + $0x278] sm:$0xff]
    %v1503 = vld [vmem:[#allocation2 + $0x280] sm:$0xff]
    %v1504 = vld [vmem:[#allocation2 + $0x288] sm:$0xff]
    %v1505 = vpack.c.bf16 %v1502, %v1501
    %v1506 = vpack.c.bf16 %v1504, %v1503
    %1507 = vmatpush.bf16.msra.mxu0 0
    %1508 = vmatpush.bf16.msra.mxu0 0
    %1509 = vmatpush.bf16.msra.mxu0 0
    %1510 = vmatpush.bf16.msra.mxu0 0
    %1511 = vmatpush.bf16.msra.mxu0 0
    %1512 = vmatpush.bf16.msra.mxu0 0
    %1513 = vmatpush.bf16.msra.mxu0 %v1506
    %1514 = vmatpush.bf16.msra.mxu0 %v1505
    %1515 = vmatmul.bf16.gmra.mxu0 %v1014
    %v1516 = vpop.f32.mrf.mxu0
    %v1517 = vadd.f32 0.0, %v1516
    %v1518 = vpop.f32.mrf.mxu0
    %v1519 = vadd.f32 0.0, %v1518
    %1520 = vmatmul.bf16.gmra.mxu0 %v1017
    %v1521 = vpop.f32.mrf.mxu0
    %v1522 = vadd.f32 0.0, %v1521
    %v1523 = vpop.f32.mrf.mxu0
    %v1524 = vadd.f32 0.0, %v1523
    %1525 = vdwg.mxu0
    %v1526 = vld [vmem:[#allocation2 + $0x290] sm:$0xff]
    %v1527 = vld [vmem:[#allocation2 + $0x298] sm:$0xff]
    %v1528 = vld [vmem:[#allocation2 + $0x2a0] sm:$0xff]
    %v1529 = vld [vmem:[#allocation2 + $0x2a8] sm:$0xff]
    %v1530 = vpack.c.bf16 %v998, %v996
    %v1531 = vpack.c.bf16 %v1527, %v1526
    %v1532 = vpack.c.bf16 %v1529, %v1528
    %v1534 = vsel %vm102, %v1530, 0
    %1536 = vmatpush.bf16.msra.mxu0 0
    %1537 = vmatpush.bf16.msra.mxu0 0
    %1538 = vmatpush.bf16.msra.mxu0 0
    %1539 = vmatpush.bf16.msra.mxu0 0
    %1540 = vmatpush.bf16.msra.mxu0 0
    %1541 = vmatpush.bf16.msra.mxu0 0
    %1542 = vmatpush.bf16.msra.mxu0 %v1532
    %1543 = vmatpush.bf16.msra.mxu0 %v1531
    %1544 = vmatmul.bf16.gmra.mxu0 %v1534
    %v1545 = vpop.f32.mrf.mxu0
    %v1546 = vadd.f32 0.0, %v1545
    %v1547 = vpop.f32.mrf.mxu0
    %v1548 = vadd.f32 0.0, %v1547
    %1549 = vdwg.mxu0
    %v1550 = vld [vmem:[%s0 + $0x50] sm:$0x3]
    %v1551 = vpack.c.bf16 %v1550, %v1550
    %v1552 = vpack.c.bf16 %v1494, %v1492
    %v1553 = vpack.c.bf16 %v1499, %v1497
    %v1554 = vpack.c.bf16 %v1519, %v1517
    %v1555 = vpack.c.bf16 %v1524, %v1522
    %v1556 = vpack.c.bf16 %v1548, %v1546
    %v1557 = vld [vmem:[#allocation2 + $0x2b0] sm:$0x1]
    %v1558 = vperm.slane %v1557, 0
    %vm1559 = vcmask 654336
    %v1561 = vsel %vm1559, %v1551, 0
    %1563 = vmatpush.bf16.msra.mxu0 0
    %1564 = vmatpush.bf16.msra.mxu0 0
    %1565 = vmatpush.bf16.msra.mxu0 0
    %1566 = vmatpush.bf16.msra.mxu0 %v1556
    %1567 = vmatpush.bf16.msra.mxu0 %v1555
    %1568 = vmatpush.bf16.msra.mxu0 %v1554
    %1569 = vmatpush.bf16.msra.mxu0 %v1553
    %1570 = vmatpush.bf16.msra.mxu0 %v1552
    %1571 = vmatmul.bf16.gmra.mxu0 %v1561
    %v1572 = vpop.f32.mrf.mxu0
    %v1573 = vadd.f32 %v1558, %v1572
    %v1574 = vpop.f32.mrf.mxu0
    %1575 = vdwg.mxu0
    %1576 = vst [vmem:[%s2 + $0x30] sm:$0x3] %v1573
    // Predicated region
    $region14: #{forward.1} parent=1 // pred_check
      _
    $region15: #{forward.1} parent=1 // pred_check_branch
      %1578 = sbr.rel (0) target = $region17
    $region16: #{forward.1} parent=1 // pred_region
      _
    $region17: #{forward.1} parent=1 // pred_fallthru
      _
    // Predicated region
    $region18: #{forward.1} parent=1 // pred_check
      _
    $region19: #{forward.1} parent=1 // pred_check_branch
      %1580 = sbr.rel (0) target = $region21
    $region20: #{forward.1} parent=1 // pred_region
      _
    $region21: #{forward.1} parent=1 // pred_fallthru
      _
    %1581 = vsyncpa [#allocation3], 1

</llo_original>
